<compile_context>
chip_gen: v7x
topology: tpu7x:2x2x1
jax: 0.10.0
libtpu: 0.0.40
codegen_flags: <defaults>
</compile_context>

<pallas_src>
import functools

import jax
import jax.numpy as jnp
from jax import lax
from jax.experimental import pallas as pl
from jax.experimental.pallas import tpu as pltpu


def _round_up(x, m):
    return ((x + m - 1) // m) * m


def _dwconv_kernel(x_ref, wt_ref, bt_ref, o_ref, xpad_ref, *, H, W, C, Hp, Lp):
    """Depthwise 7x7 conv (padding=3, groups=C) in lane-dense (H, W*C) layout."""
    WC = W * C
    # Zero only the padding strips (rows [H, Hp) and lanes [W*C, Lp)); the
    # image region is overwritten every step, so the kernel has no cross-step
    # scratch dependence (safe under core-parallel execution of the N axis).
    xpad_ref[pl.ds(H, Hp - H), :] = jnp.zeros((Hp - H, Lp), jnp.float32)
    xpad_ref[:, pl.ds(WC, Lp - WC)] = jnp.zeros((Hp, Lp - WC), jnp.float32)
    xpad_ref[pl.ds(0, H), pl.ds(0, WC)] = x_ref[0]
    xp = xpad_ref[...]

    acc = jnp.zeros((H, WC), jnp.float32)
    for i in range(7):                       # vertical tap: input row h + i - 3
        sr = (3 - i) % Hp
        xi = pltpu.roll(xp, sr, axis=0) if sr else xp
        for j in range(7):                   # horizontal tap: input col w + j - 3
            sl = ((3 - j) * C) % Lp
            xij = pltpu.roll(xi, sl, axis=1) if sl else xi
            k = i * 7 + j
            acc = acc + xij[:H, :WC] * wt_ref[k:k + 1, :]
    o_ref[0] = acc + bt_ref[...]


def _mlp_kernel(y_ref, lnw_ref, lnb_ref, w1_ref, b1_ref, g_ref, bb_ref,
                w2_ref, b2_ref, o_ref, *, HW):
    """LayerNorm(C) -> Linear(C,4C) -> GELU(exact) -> GRN -> Linear(4C,C)."""
    y = y_ref[0]                                        # (HW, C) f32
    # LayerNorm over channels (eps = 1e-6); statistics in f32.
    mu = jnp.mean(y, axis=-1, keepdims=True)
    yc = y - mu
    var = jnp.mean(yc * yc, axis=-1, keepdims=True)
    yn = yc * lax.rsqrt(var + 1e-6) * lnw_ref[...] + lnb_ref[...]

    # pwconv1 on the MXU (bf16 operands, f32 accumulation).
    h = jnp.dot(yn.astype(jnp.bfloat16), w1_ref[...],
                preferred_element_type=jnp.float32) + b1_ref[...]

    # Exact (erf) GELU, matching nn.GELU() default.
    h = 0.5 * h * (1.0 + lax.erf(h * 0.7071067811865476))

    # GRN: Gx = ||h||_2 over spatial positions per channel (f32 statistics);
    # the big (HW,) reduction runs on the MXU as a (1,HW)@(HW,4C) matmul.
    # out = gamma*(h*Nx) + beta + h  ==  h*(gamma*Nx + 1) + beta  (single pass).
    gsq = jnp.dot(jnp.ones((1, HW), jnp.float32), h * h,
                  preferred_element_type=jnp.float32)   # (1, 4C) sum of squares
    gx = jnp.sqrt(gsq)
    nx = gx / (jnp.mean(gx, axis=-1, keepdims=True) + 1e-6)
    h = h * (g_ref[...] * nx + 1.0) + bb_ref[...]

    # pwconv2 on the MXU (bf16 operands, f32 accumulation).
    o_ref[0] = jnp.dot(h.astype(jnp.bfloat16), w2_ref[...],
                       preferred_element_type=jnp.float32) + b2_ref[...]


def cab_forward(x_nchw, params):
    """x_nchw: (N, C, H, W) float32. Returns (N, C, H, W) float32."""
    (dw_w, dw_b, ln_w, ln_b, w1, b1, gamma, beta, w2, b2) = params
    N, C, H, W = x_nchw.shape
    HID = 4 * C
    WC = W * C
    HW = H * W
    Hp = _round_up(H + 6, 8)            # padded rows   (>= H + 6, sublane aligned)
    Lp = _round_up((W + 6) * C, 128)    # padded lanes  (>= (W+6)*C, lane aligned)

    # NCHW -> NHWC (required by the module's math); the reshape to the
    # lane-dense (N, H, W*C) view is a free row-major reshape.
    x = jnp.transpose(x_nchw, (0, 2, 3, 1)).astype(jnp.float32).reshape(N, H, WC)

    # Depthwise weights/bias tiled W times along lanes so they broadcast
    # directly against lane-dense image rows: wt[i*7+j, w*C+c] = dw_w[i,j,c].
    wt = jnp.tile(dw_w, (1, 1, W)).reshape(49, WC)
    bt = jnp.tile(dw_b, (1, W))                          # (1, W*C)

    f32 = 4
    est1 = f32 * (4 * H * WC + 50 * WC + Hp * Lp)
    vmem1 = int(min(64 << 20, max(32 << 20, 2 * est1)))

    conv_out = pl.pallas_call(
        functools.partial(_dwconv_kernel, H=H, W=W, C=C, Hp=Hp, Lp=Lp),
        out_shape=jax.ShapeDtypeStruct((N, H, WC), jnp.float32),
        grid_spec=pltpu.PrefetchScalarGridSpec(
            num_scalar_prefetch=0,
            grid=(N,),
            in_specs=[
                pl.BlockSpec((1, H, WC), lambda n: (n, 0, 0)),   # image (lane-dense)
                pl.BlockSpec((49, WC), lambda n: (0, 0)),        # tiled dw weights
                pl.BlockSpec((1, WC), lambda n: (0, 0)),         # tiled dw bias
            ],
            out_specs=pl.BlockSpec((1, H, WC), lambda n: (n, 0, 0)),
            scratch_shapes=[pltpu.VMEM((Hp, Lp), jnp.float32)],
        ),
        compiler_params=pltpu.CompilerParams(
            dimension_semantics=("parallel",), vmem_limit_bytes=vmem1),
    )(x, wt, bt)

    # Free HBM reshape between the two kernels: (N, H, W*C) -> (N, H*W, C).
    y = conv_out.reshape(N, HW, C)

    est2 = f32 * (4 * HW * C + 3 * HW * HID + 8 * HID + 8 * C) + 2 * (2 * C * HID)
    vmem2 = int(min(64 << 20, max(32 << 20, 2 * est2)))

    out_flat = pl.pallas_call(
        functools.partial(_mlp_kernel, HW=HW),
        out_shape=jax.ShapeDtypeStruct((N, HW, C), jnp.float32),
        grid_spec=pltpu.PrefetchScalarGridSpec(
            num_scalar_prefetch=0,
            grid=(N,),
            in_specs=[
                pl.BlockSpec((1, HW, C), lambda n: (n, 0, 0)),   # conv output
                pl.BlockSpec((1, C), lambda n: (0, 0)),          # layernorm weight
                pl.BlockSpec((1, C), lambda n: (0, 0)),          # layernorm bias
                pl.BlockSpec((C, HID), lambda n: (0, 0)),        # pwconv1 weight (bf16)
                pl.BlockSpec((1, HID), lambda n: (0, 0)),        # pwconv1 bias
                pl.BlockSpec((1, HID), lambda n: (0, 0)),        # GRN gamma
                pl.BlockSpec((1, HID), lambda n: (0, 0)),        # GRN beta
                pl.BlockSpec((HID, C), lambda n: (0, 0)),        # pwconv2 weight (bf16)
                pl.BlockSpec((1, C), lambda n: (0, 0)),          # pwconv2 bias
            ],
            out_specs=pl.BlockSpec((1, HW, C), lambda n: (n, 0, 0)),
        ),
        compiler_params=pltpu.CompilerParams(
            dimension_semantics=("parallel",), vmem_limit_bytes=vmem2),
    )(y, ln_w, ln_b, w1.astype(jnp.bfloat16), b1, gamma, beta,
      w2.astype(jnp.bfloat16), b2)

    out_nhwc = out_flat.reshape(N, H, W, C)
    return jnp.transpose(out_nhwc, (0, 3, 1, 2))


def cab_reference(x_nchw, params):
    """Pure-JAX (XLA) reference of the same forward pass, for self-checking."""
    (dw_w, dw_b, ln_w, ln_b, w1, b1, gamma, beta, w2, b2) = params
    N, C, H, W = x_nchw.shape
    wk = jnp.transpose(dw_w, (2, 0, 1))[:, None, :, :]          # (C,1,7,7) OIHW
    y = lax.conv_general_dilated(
        x_nchw, wk, window_strides=(1, 1), padding=((3, 3), (3, 3)),
        dimension_numbers=("NCHW", "OIHW", "NCHW"), feature_group_count=C)
    y = y + dw_b.reshape(1, C, 1, 1)
    y = jnp.transpose(y, (0, 2, 3, 1))                           # NHWC
    mu = jnp.mean(y, -1, keepdims=True)
    var = jnp.mean((y - mu) ** 2, -1, keepdims=True)
    y = (y - mu) / jnp.sqrt(var + 1e-6) * ln_w.reshape(1, 1, 1, C) \
        + ln_b.reshape(1, 1, 1, C)
    h = y @ w1 + b1.reshape(1, 1, 1, -1)
    h = 0.5 * h * (1.0 + lax.erf(h * 0.7071067811865476))
    gx = jnp.sqrt(jnp.sum(h * h, axis=(1, 2), keepdims=True))
    nx = gx / (jnp.mean(gx, -1, keepdims=True) + 1e-6)
    h = gamma.reshape(1, 1, 1, -1) * (h * nx) + beta.reshape(1, 1, 1, -1) + h
    out = h @ w2 + b2.reshape(1, 1, 1, -1)
    return jnp.transpose(out, (0, 3, 1, 2))


def init_params(key, num_feat):
    """Deterministic synthetic params with the shapes implied by Next(num_feat).
    Linear weights stored as (in, out); depthwise conv weight as (7, 7, C)."""
    C = num_feat
    HID = 4 * C
    ks = jax.random.split(key, 6)
    dw_w = 0.1 * jax.random.normal(ks[0], (7, 7, C), jnp.float32)
    dw_b = 0.1 * jax.random.normal(ks[1], (1, C), jnp.float32)
    ln_w = jnp.ones((1, C), jnp.float32)      # LayerNorm init: ones / zeros
    ln_b = jnp.zeros((1, C), jnp.float32)
    w1 = 0.1 * jax.random.normal(ks[2], (C, HID), jnp.float32)
    b1 = 0.1 * jax.random.normal(ks[3], (1, HID), jnp.float32)
    # GRN inits to zeros in the module; use small values to exercise the path.
    gamma = 0.05 * jnp.ones((1, HID), jnp.float32)
    beta = 0.02 * jnp.ones((1, HID), jnp.float32)
    w2 = 0.1 * jax.random.normal(ks[4], (HID, C), jnp.float32)
    b2 = 0.1 * jax.random.normal(ks[5], (1, C), jnp.float32)
    return (dw_w, dw_b, ln_w, ln_b, w1, b1, gamma, beta, w2, b2)


if __name__ == "__main__":
    key = jax.random.PRNGKey(0)
    k_x, k_p = jax.random.split(key)

    N, C, H, W = 2, 16, 16, 16        # num_feat=16 (so Next hidden = 64)
    x = jax.random.normal(k_x, (N, C, H, W), jnp.float32)
    params = init_params(k_p, C)

    out = jax.block_until_ready(cab_forward(x, params))
    assert out.shape == (N, C, H, W), out.shape
    assert bool(jnp.all(jnp.isfinite(out)))

    # Self-check against the pure-JAX reference (loose tolerance: matmuls use
    # bf16 operands with f32 accumulation inside the kernel).
    ref = jax.block_until_ready(cab_reference(x, params))
    max_err = float(jnp.max(jnp.abs(out - ref)))
    assert max_err < 5e-2, max_err

    print("KERNEL_OK")
</pallas_src>

<mosaic_0001>
module attributes {stable_mosaic.version = 11 : i64} {
  func.func @_dwconv_kernel(%arg0: i32, %arg1: memref<1x16x256xf32, #tpu.memory_space<vmem>>, %arg2: memref<49x256xf32, #tpu.memory_space<vmem>>, %arg3: memref<1x256xf32, #tpu.memory_space<vmem>>, %arg4: memref<1x16x256xf32, #tpu.memory_space<vmem>>, %arg5: memref<24x384xf32, #tpu.memory_space<vmem>>) attributes {dimension_semantics = [#tpu.dimension_semantics<parallel>], iteration_bounds = array<i64: 2>, scalar_prefetch = 0 : i64, scratch_operands = 1 : i64, tpu.core_type = #tpu.core_type<tc>, window_params = [{transform_indices = @transform_0, window_bounds = array<i64: 1, 16, 256>}, {pipeline_mode = #tpu.pipeline_mode<synchronous>, transform_indices = @transform_1, window_bounds = array<i64: 49, 256>}, {pipeline_mode = #tpu.pipeline_mode<synchronous>, transform_indices = @transform_2, window_bounds = array<i64: 1, 256>}, {transform_indices = @transform_3, window_bounds = array<i64: 1, 16, 256>}]} {
    %cst = arith.constant 0.000000e+00 : f32
    %0 = vector.broadcast %cst : f32 to vector<8x384xf32>
    %c16 = arith.constant 16 : index
    %c0 = arith.constant 0 : index
    %1 = vector.load %arg5[%c16, %c0] : memref<24x384xf32, #tpu.memory_space<vmem>>, vector<8x384xf32>
    tpu.vector_store %arg5[%c16, %c0], %0 {strides = array<i32>} : memref<24x384xf32, #tpu.memory_space<vmem>>, vector<8x384xf32>,
    %cst_0 = arith.constant 0.000000e+00 : f32
    %2 = vector.broadcast %cst_0 : f32 to vector<24x128xf32>
    %c0_1 = arith.constant 0 : index
    %c256 = arith.constant 256 : index
    %3 = vector.load %arg5[%c0_1, %c256] : memref<24x384xf32, #tpu.memory_space<vmem>>, vector<24x128xf32>
    tpu.vector_store %arg5[%c0_1, %c256], %2 {strides = array<i32>} : memref<24x384xf32, #tpu.memory_space<vmem>>, vector<24x128xf32>,
    %c0_2 = arith.constant 0 : index
    %c0_3 = arith.constant 0 : index
    %c0_4 = arith.constant 0 : index
    %4 = vector.load %arg1[%c0_2, %c0_3, %c0_4] : memref<1x16x256xf32, #tpu.memory_space<vmem>>, vector<1x16x256xf32>
    %5 = vector.shape_cast %4 : vector<1x16x256xf32> to vector<16x256xf32>
    %c0_5 = arith.constant 0 : index
    %c0_6 = arith.constant 0 : index
    %6 = vector.load %arg5[%c0_5, %c0_6] : memref<24x384xf32, #tpu.memory_space<vmem>>, vector<16x256xf32>
    tpu.vector_store %arg5[%c0_5, %c0_6], %5 {strides = array<i32>} : memref<24x384xf32, #tpu.memory_space<vmem>>, vector<16x256xf32>,
    %c0_7 = arith.constant 0 : index
    %c0_8 = arith.constant 0 : index
    %7 = vector.load %arg5[%c0_7, %c0_8] : memref<24x384xf32, #tpu.memory_space<vmem>>, vector<24x384xf32>
    %cst_9 = arith.constant 0.000000e+00 : f32
    %8 = vector.broadcast %cst_9 : f32 to vector<16x256xf32>
    %c3_i32 = arith.constant 3 : i32
    %9 = tpu.dynamic_rotate %7 by %c3_i32 dim 0 : vector<24x384xf32>, i32 -> vector<24x384xf32>
    %c48_i32 = arith.constant 48 : i32
    %10 = tpu.dynamic_rotate %9 by %c48_i32 dim 1 : vector<24x384xf32>, i32 -> vector<24x384xf32>
    %11 = vector.extract_strided_slice %10 {offsets = [0, 0], sizes = [16, 256], strides = [1, 1]} : vector<24x384xf32> to vector<16x256xf32>
    %c0_10 = arith.constant 0 : index
    %c0_11 = arith.constant 0 : index
    %12 = vector.load %arg2[%c0_10, %c0_11] : memref<49x256xf32, #tpu.memory_space<vmem>>, vector<1x256xf32>
    %13 = vector.broadcast %12 : vector<1x256xf32> to vector<16x256xf32>
    %14 = arith.mulf %11, %13 : vector<16x256xf32>
    %15 = arith.addf %8, %14 : vector<16x256xf32>
    %c32_i32 = arith.constant 32 : i32
    %16 = tpu.dynamic_rotate %9 by %c32_i32 dim 1 : vector<24x384xf32>, i32 -> vector<24x384xf32>
    %17 = vector.extract_strided_slice %16 {offsets = [0, 0], sizes = [16, 256], strides = [1, 1]} : vector<24x384xf32> to vector<16x256xf32>
    %c1 = arith.constant 1 : index
    %c0_12 = arith.constant 0 : index
    %18 = vector.load %arg2[%c1, %c0_12] : memref<49x256xf32, #tpu.memory_space<vmem>>, vector<1x256xf32>
    %19 = vector.broadcast %18 : vector<1x256xf32> to vector<16x256xf32>
    %20 = arith.mulf %17, %19 : vector<16x256xf32>
    %21 = arith.addf %15, %20 : vector<16x256xf32>
    %c16_i32 = arith.constant 16 : i32
    %22 = tpu.dynamic_rotate %9 by %c16_i32 dim 1 : vector<24x384xf32>, i32 -> vector<24x384xf32>
    %23 = vector.extract_strided_slice %22 {offsets = [0, 0], sizes = [16, 256], strides = [1, 1]} : vector<24x384xf32> to vector<16x256xf32>
    %c2 = arith.constant 2 : index
    %c0_13 = arith.constant 0 : index
    %24 = vector.load %arg2[%c2, %c0_13] : memref<49x256xf32, #tpu.memory_space<vmem>>, vector<1x256xf32>
    %25 = vector.broadcast %24 : vector<1x256xf32> to vector<16x256xf32>
    %26 = arith.mulf %23, %25 : vector<16x256xf32>
    %27 = arith.addf %21, %26 : vector<16x256xf32>
    %28 = vector.extract_strided_slice %9 {offsets = [0, 0], sizes = [16, 256], strides = [1, 1]} : vector<24x384xf32> to vector<16x256xf32>
    %c3 = arith.constant 3 : index
    %c0_14 = arith.constant 0 : index
    %29 = vector.load %arg2[%c3, %c0_14] : memref<49x256xf32, #tpu.memory_space<vmem>>, vector<1x256xf32>
    %30 = vector.broadcast %29 : vector<1x256xf32> to vector<16x256xf32>
    %31 = arith.mulf %28, %30 : vector<16x256xf32>
    %32 = arith.addf %27, %31 : vector<16x256xf32>
    %c368_i32 = arith.constant 368 : i32
    %33 = tpu.dynamic_rotate %9 by %c368_i32 dim 1 : vector<24x384xf32>, i32 -> vector<24x384xf32>
    %34 = vector.extract_strided_slice %33 {offsets = [0, 0], sizes = [16, 256], strides = [1, 1]} : vector<24x384xf32> to vector<16x256xf32>
    %c4 = arith.constant 4 : index
    %c0_15 = arith.constant 0 : index
    %35 = vector.load %arg2[%c4, %c0_15] : memref<49x256xf32, #tpu.memory_space<vmem>>, vector<1x256xf32>
    %36 = vector.broadcast %35 : vector<1x256xf32> to vector<16x256xf32>
    %37 = arith.mulf %34, %36 : vector<16x256xf32>
    %38 = arith.addf %32, %37 : vector<16x256xf32>
    %c352_i32 = arith.constant 352 : i32
    %39 = tpu.dynamic_rotate %9 by %c352_i32 dim 1 : vector<24x384xf32>, i32 -> vector<24x384xf32>
    %40 = vector.extract_strided_slice %39 {offsets = [0, 0], sizes = [16, 256], strides = [1, 1]} : vector<24x384xf32> to vector<16x256xf32>
    %c5 = arith.constant 5 : index
    %c0_16 = arith.constant 0 : index
    %41 = vector.load %arg2[%c5, %c0_16] : memref<49x256xf32, #tpu.memory_space<vmem>>, vector<1x256xf32>
    %42 = vector.broadcast %41 : vector<1x256xf32> to vector<16x256xf32>
    %43 = arith.mulf %40, %42 : vector<16x256xf32>
    %44 = arith.addf %38, %43 : vector<16x256xf32>
    %c336_i32 = arith.constant 336 : i32
    %45 = tpu.dynamic_rotate %9 by %c336_i32 dim 1 : vector<24x384xf32>, i32 -> vector<24x384xf32>
    %46 = vector.extract_strided_slice %45 {offsets = [0, 0], sizes = [16, 256], strides = [1, 1]} : vector<24x384xf32> to vector<16x256xf32>
    %c6 = arith.constant 6 : index
    %c0_17 = arith.constant 0 : index
    %47 = vector.load %arg2[%c6, %c0_17] : memref<49x256xf32, #tpu.memory_space<vmem>>, vector<1x256xf32>
    %48 = vector.broadcast %47 : vector<1x256xf32> to vector<16x256xf32>
    %49 = arith.mulf %46, %48 : vector<16x256xf32>
    %50 = arith.addf %44, %49 : vector<16x256xf32>
    %c2_i32 = arith.constant 2 : i32
    %51 = tpu.dynamic_rotate %7 by %c2_i32 dim 0 : vector<24x384xf32>, i32 -> vector<24x384xf32>
    %c48_i32_18 = arith.constant 48 : i32
    %52 = tpu.dynamic_rotate %51 by %c48_i32_18 dim 1 : vector<24x384xf32>, i32 -> vector<24x384xf32>
    %53 = vector.extract_strided_slice %52 {offsets = [0, 0], sizes = [16, 256], strides = [1, 1]} : vector<24x384xf32> to vector<16x256xf32>
    %c7 = arith.constant 7 : index
    %c0_19 = arith.constant 0 : index
    %54 = vector.load %arg2[%c7, %c0_19] : memref<49x256xf32, #tpu.memory_space<vmem>>, vector<1x256xf32>
    %55 = vector.broadcast %54 : vector<1x256xf32> to vector<16x256xf32>
    %56 = arith.mulf %53, %55 : vector<16x256xf32>
    %57 = arith.addf %50, %56 : vector<16x256xf32>
    %c32_i32_20 = arith.constant 32 : i32
    %58 = tpu.dynamic_rotate %51 by %c32_i32_20 dim 1 : vector<24x384xf32>, i32 -> vector<24x384xf32>
    %59 = vector.extract_strided_slice %58 {offsets = [0, 0], sizes = [16, 256], strides = [1, 1]} : vector<24x384xf32> to vector<16x256xf32>
    %c8 = arith.constant 8 : index
    %c0_21 = arith.constant 0 : index
    %60 = vector.load %arg2[%c8, %c0_21] : memref<49x256xf32, #tpu.memory_space<vmem>>, vector<1x256xf32>
    %61 = vector.broadcast %60 : vector<1x256xf32> to vector<16x256xf32>
    %62 = arith.mulf %59, %61 : vector<16x256xf32>
    %63 = arith.addf %57, %62 : vector<16x256xf32>
    %c16_i32_22 = arith.constant 16 : i32
    %64 = tpu.dynamic_rotate %51 by %c16_i32_22 dim 1 : vector<24x384xf32>, i32 -> vector<24x384xf32>
    %65 = vector.extract_strided_slice %64 {offsets = [0, 0], sizes = [16, 256], strides = [1, 1]} : vector<24x384xf32> to vector<16x256xf32>
    %c9 = arith.constant 9 : index
    %c0_23 = arith.constant 0 : index
    %66 = vector.load %arg2[%c9, %c0_23] : memref<49x256xf32, #tpu.memory_space<vmem>>, vector<1x256xf32>
    %67 = vector.broadcast %66 : vector<1x256xf32> to vector<16x256xf32>
    %68 = arith.mulf %65, %67 : vector<16x256xf32>
    %69 = arith.addf %63, %68 : vector<16x256xf32>
    %70 = vector.extract_strided_slice %51 {offsets = [0, 0], sizes = [16, 256], strides = [1, 1]} : vector<24x384xf32> to vector<16x256xf32>
    %c10 = arith.constant 10 : index
    %c0_24 = arith.constant 0 : index
    %71 = vector.load %arg2[%c10, %c0_24] : memref<49x256xf32, #tpu.memory_space<vmem>>, vector<1x256xf32>
    %72 = vector.broadcast %71 : vector<1x256xf32> to vector<16x256xf32>
    %73 = arith.mulf %70, %72 : vector<16x256xf32>
    %74 = arith.addf %69, %73 : vector<16x256xf32>
    %c368_i32_25 = arith.constant 368 : i32
    %75 = tpu.dynamic_rotate %51 by %c368_i32_25 dim 1 : vector<24x384xf32>, i32 -> vector<24x384xf32>
    %76 = vector.extract_strided_slice %75 {offsets = [0, 0], sizes = [16, 256], strides = [1, 1]} : vector<24x384xf32> to vector<16x256xf32>
    %c11 = arith.constant 11 : index
    %c0_26 = arith.constant 0 : index
    %77 = vector.load %arg2[%c11, %c0_26] : memref<49x256xf32, #tpu.memory_space<vmem>>, vector<1x256xf32>
    %78 = vector.broadcast %77 : vector<1x256xf32> to vector<16x256xf32>
    %79 = arith.mulf %76, %78 : vector<16x256xf32>
    %80 = arith.addf %74, %79 : vector<16x256xf32>
    %c352_i32_27 = arith.constant 352 : i32
    %81 = tpu.dynamic_rotate %51 by %c352_i32_27 dim 1 : vector<24x384xf32>, i32 -> vector<24x384xf32>
    %82 = vector.extract_strided_slice %81 {offsets = [0, 0], sizes = [16, 256], strides = [1, 1]} : vector<24x384xf32> to vector<16x256xf32>
    %c12 = arith.constant 12 : index
    %c0_28 = arith.constant 0 : index
    %83 = vector.load %arg2[%c12, %c0_28] : memref<49x256xf32, #tpu.memory_space<vmem>>, vector<1x256xf32>
    %84 = vector.broadcast %83 : vector<1x256xf32> to vector<16x256xf32>
    %85 = arith.mulf %82, %84 : vector<16x256xf32>
    %86 = arith.addf %80, %85 : vector<16x256xf32>
    %c336_i32_29 = arith.constant 336 : i32
    %87 = tpu.dynamic_rotate %51 by %c336_i32_29 dim 1 : vector<24x384xf32>, i32 -> vector<24x384xf32>
    %88 = vector.extract_strided_slice %87 {offsets = [0, 0], sizes = [16, 256], strides = [1, 1]} : vector<24x384xf32> to vector<16x256xf32>
    %c13 = arith.constant 13 : index
    %c0_30 = arith.constant 0 : index
    %89 = vector.load %arg2[%c13, %c0_30] : memref<49x256xf32, #tpu.memory_space<vmem>>, vector<1x256xf32>
    %90 = vector.broadcast %89 : vector<1x256xf32> to vector<16x256xf32>
    %91 = arith.mulf %88, %90 : vector<16x256xf32>
    %92 = arith.addf %86, %91 : vector<16x256xf32>
    %c1_i32 = arith.constant 1 : i32
    %93 = tpu.dynamic_rotate %7 by %c1_i32 dim 0 : vector<24x384xf32>, i32 -> vector<24x384xf32>
    %c48_i32_31 = arith.constant 48 : i32
    %94 = tpu.dynamic_rotate %93 by %c48_i32_31 dim 1 : vector<24x384xf32>, i32 -> vector<24x384xf32>
    %95 = vector.extract_strided_slice %94 {offsets = [0, 0], sizes = [16, 256], strides = [1, 1]} : vector<24x384xf32> to vector<16x256xf32>
    %c14 = arith.constant 14 : index
    %c0_32 = arith.constant 0 : index
    %96 = vector.load %arg2[%c14, %c0_32] : memref<49x256xf32, #tpu.memory_space<vmem>>, vector<1x256xf32>
    %97 = vector.broadcast %96 : vector<1x256xf32> to vector<16x256xf32>
    %98 = arith.mulf %95, %97 : vector<16x256xf32>
    %99 = arith.addf %92, %98 : vector<16x256xf32>
    %c32_i32_33 = arith.constant 32 : i32
    %100 = tpu.dynamic_rotate %93 by %c32_i32_33 dim 1 : vector<24x384xf32>, i32 -> vector<24x384xf32>
    %101 = vector.extract_strided_slice %100 {offsets = [0, 0], sizes = [16, 256], strides = [1, 1]} : vector<24x384xf32> to vector<16x256xf32>
    %c15 = arith.constant 15 : index
    %c0_34 = arith.constant 0 : index
    %102 = vector.load %arg2[%c15, %c0_34] : memref<49x256xf32, #tpu.memory_space<vmem>>, vector<1x256xf32>
    %103 = vector.broadcast %102 : vector<1x256xf32> to vector<16x256xf32>
    %104 = arith.mulf %101, %103 : vector<16x256xf32>
    %105 = arith.addf %99, %104 : vector<16x256xf32>
    %c16_i32_35 = arith.constant 16 : i32
    %106 = tpu.dynamic_rotate %93 by %c16_i32_35 dim 1 : vector<24x384xf32>, i32 -> vector<24x384xf32>
    %107 = vector.extract_strided_slice %106 {offsets = [0, 0], sizes = [16, 256], strides = [1, 1]} : vector<24x384xf32> to vector<16x256xf32>
    %c16_36 = arith.constant 16 : index
    %c0_37 = arith.constant 0 : index
    %108 = vector.load %arg2[%c16_36, %c0_37] : memref<49x256xf32, #tpu.memory_space<vmem>>, vector<1x256xf32>
    %109 = vector.broadcast %108 : vector<1x256xf32> to vector<16x256xf32>
    %110 = arith.mulf %107, %109 : vector<16x256xf32>
    %111 = arith.addf %105, %110 : vector<16x256xf32>
    %112 = vector.extract_strided_slice %93 {offsets = [0, 0], sizes = [16, 256], strides = [1, 1]} : vector<24x384xf32> to vector<16x256xf32>
    %c17 = arith.constant 17 : index
    %c0_38 = arith.constant 0 : index
    %113 = vector.load %arg2[%c17, %c0_38] : memref<49x256xf32, #tpu.memory_space<vmem>>, vector<1x256xf32>
    %114 = vector.broadcast %113 : vector<1x256xf32> to vector<16x256xf32>
    %115 = arith.mulf %112, %114 : vector<16x256xf32>
    %116 = arith.addf %111, %115 : vector<16x256xf32>
    %c368_i32_39 = arith.constant 368 : i32
    %117 = tpu.dynamic_rotate %93 by %c368_i32_39 dim 1 : vector<24x384xf32>, i32 -> vector<24x384xf32>
    %118 = vector.extract_strided_slice %117 {offsets = [0, 0], sizes = [16, 256], strides = [1, 1]} : vector<24x384xf32> to vector<16x256xf32>
    %c18 = arith.constant 18 : index
    %c0_40 = arith.constant 0 : index
    %119 = vector.load %arg2[%c18, %c0_40] : memref<49x256xf32, #tpu.memory_space<vmem>>, vector<1x256xf32>
    %120 = vector.broadcast %119 : vector<1x256xf32> to vector<16x256xf32>
    %121 = arith.mulf %118, %120 : vector<16x256xf32>
    %122 = arith.addf %116, %121 : vector<16x256xf32>
    %c352_i32_41 = arith.constant 352 : i32
    %123 = tpu.dynamic_rotate %93 by %c352_i32_41 dim 1 : vector<24x384xf32>, i32 -> vector<24x384xf32>
    %124 = vector.extract_strided_slice %123 {offsets = [0, 0], sizes = [16, 256], strides = [1, 1]} : vector<24x384xf32> to vector<16x256xf32>
    %c19 = arith.constant 19 : index
    %c0_42 = arith.constant 0 : index
    %125 = vector.load %arg2[%c19, %c0_42] : memref<49x256xf32, #tpu.memory_space<vmem>>, vector<1x256xf32>
    %126 = vector.broadcast %125 : vector<1x256xf32> to vector<16x256xf32>
    %127 = arith.mulf %124, %126 : vector<16x256xf32>
    %128 = arith.addf %122, %127 : vector<16x256xf32>
    %c336_i32_43 = arith.constant 336 : i32
    %129 = tpu.dynamic_rotate %93 by %c336_i32_43 dim 1 : vector<24x384xf32>, i32 -> vector<24x384xf32>
    %130 = vector.extract_strided_slice %129 {offsets = [0, 0], sizes = [16, 256], strides = [1, 1]} : vector<24x384xf32> to vector<16x256xf32>
    %c20 = arith.constant 20 : index
    %c0_44 = arith.constant 0 : index
    %131 = vector.load %arg2[%c20, %c0_44] : memref<49x256xf32, #tpu.memory_space<vmem>>, vector<1x256xf32>
    %132 = vector.broadcast %131 : vector<1x256xf32> to vector<16x256xf32>
    %133 = arith.mulf %130, %132 : vector<16x256xf32>
    %134 = arith.addf %128, %133 : vector<16x256xf32>
    %c48_i32_45 = arith.constant 48 : i32
    %135 = tpu.dynamic_rotate %7 by %c48_i32_45 dim 1 : vector<24x384xf32>, i32 -> vector<24x384xf32>
    %136 = vector.extract_strided_slice %135 {offsets = [0, 0], sizes = [16, 256], strides = [1, 1]} : vector<24x384xf32> to vector<16x256xf32>
    %c21 = arith.constant 21 : index
    %c0_46 = arith.constant 0 : index
    %137 = vector.load %arg2[%c21, %c0_46] : memref<49x256xf32, #tpu.memory_space<vmem>>, vector<1x256xf32>
    %138 = vector.broadcast %137 : vector<1x256xf32> to vector<16x256xf32>
    %139 = arith.mulf %136, %138 : vector<16x256xf32>
    %140 = arith.addf %134, %139 : vector<16x256xf32>
    %c32_i32_47 = arith.constant 32 : i32
    %141 = tpu.dynamic_rotate %7 by %c32_i32_47 dim 1 : vector<24x384xf32>, i32 -> vector<24x384xf32>
    %142 = vector.extract_strided_slice %141 {offsets = [0, 0], sizes = [16, 256], strides = [1, 1]} : vector<24x384xf32> to vector<16x256xf32>
    %c22 = arith.constant 22 : index
    %c0_48 = arith.constant 0 : index
    %143 = vector.load %arg2[%c22, %c0_48] : memref<49x256xf32, #tpu.memory_space<vmem>>, vector<1x256xf32>
    %144 = vector.broadcast %143 : vector<1x256xf32> to vector<16x256xf32>
    %145 = arith.mulf %142, %144 : vector<16x256xf32>
    %146 = arith.addf %140, %145 : vector<16x256xf32>
    %c16_i32_49 = arith.constant 16 : i32
    %147 = tpu.dynamic_rotate %7 by %c16_i32_49 dim 1 : vector<24x384xf32>, i32 -> vector<24x384xf32>
    %148 = vector.extract_strided_slice %147 {offsets = [0, 0], sizes = [16, 256], strides = [1, 1]} : vector<24x384xf32> to vector<16x256xf32>
    %c23 = arith.constant 23 : index
    %c0_50 = arith.constant 0 : index
    %149 = vector.load %arg2[%c23, %c0_50] : memref<49x256xf32, #tpu.memory_space<vmem>>, vector<1x256xf32>
    %150 = vector.broadcast %149 : vector<1x256xf32> to vector<16x256xf32>
    %151 = arith.mulf %148, %150 : vector<16x256xf32>
    %152 = arith.addf %146, %151 : vector<16x256xf32>
    %153 = vector.extract_strided_slice %7 {offsets = [0, 0], sizes = [16, 256], strides = [1, 1]} : vector<24x384xf32> to vector<16x256xf32>
    %c24 = arith.constant 24 : index
    %c0_51 = arith.constant 0 : index
    %154 = vector.load %arg2[%c24, %c0_51] : memref<49x256xf32, #tpu.memory_space<vmem>>, vector<1x256xf32>
    %155 = vector.broadcast %154 : vector<1x256xf32> to vector<16x256xf32>
    %156 = arith.mulf %153, %155 : vector<16x256xf32>
    %157 = arith.addf %152, %156 : vector<16x256xf32>
    %c368_i32_52 = arith.constant 368 : i32
    %158 = tpu.dynamic_rotate %7 by %c368_i32_52 dim 1 : vector<24x384xf32>, i32 -> vector<24x384xf32>
    %159 = vector.extract_strided_slice %158 {offsets = [0, 0], sizes = [16, 256], strides = [1, 1]} : vector<24x384xf32> to vector<16x256xf32>
    %c25 = arith.constant 25 : index
    %c0_53 = arith.constant 0 : index
    %160 = vector.load %arg2[%c25, %c0_53] : memref<49x256xf32, #tpu.memory_space<vmem>>, vector<1x256xf32>
    %161 = vector.broadcast %160 : vector<1x256xf32> to vector<16x256xf32>
    %162 = arith.mulf %159, %161 : vector<16x256xf32>
    %163 = arith.addf %157, %162 : vector<16x256xf32>
    %c352_i32_54 = arith.constant 352 : i32
    %164 = tpu.dynamic_rotate %7 by %c352_i32_54 dim 1 : vector<24x384xf32>, i32 -> vector<24x384xf32>
    %165 = vector.extract_strided_slice %164 {offsets = [0, 0], sizes = [16, 256], strides = [1, 1]} : vector<24x384xf32> to vector<16x256xf32>
    %c26 = arith.constant 26 : index
    %c0_55 = arith.constant 0 : index
    %166 = vector.load %arg2[%c26, %c0_55] : memref<49x256xf32, #tpu.memory_space<vmem>>, vector<1x256xf32>
    %167 = vector.broadcast %166 : vector<1x256xf32> to vector<16x256xf32>
    %168 = arith.mulf %165, %167 : vector<16x256xf32>
    %169 = arith.addf %163, %168 : vector<16x256xf32>
    %c336_i32_56 = arith.constant 336 : i32
    %170 = tpu.dynamic_rotate %7 by %c336_i32_56 dim 1 : vector<24x384xf32>, i32 -> vector<24x384xf32>
    %171 = vector.extract_strided_slice %170 {offsets = [0, 0], sizes = [16, 256], strides = [1, 1]} : vector<24x384xf32> to vector<16x256xf32>
    %c27 = arith.constant 27 : index
    %c0_57 = arith.constant 0 : index
    %172 = vector.load %arg2[%c27, %c0_57] : memref<49x256xf32, #tpu.memory_space<vmem>>, vector<1x256xf32>
    %173 = vector.broadcast %172 : vector<1x256xf32> to vector<16x256xf32>
    %174 = arith.mulf %171, %173 : vector<16x256xf32>
    %175 = arith.addf %169, %174 : vector<16x256xf32>
    %c23_i32 = arith.constant 23 : i32
    %176 = tpu.dynamic_rotate %7 by %c23_i32 dim 0 : vector<24x384xf32>, i32 -> vector<24x384xf32>
    %c48_i32_58 = arith.constant 48 : i32
    %177 = tpu.dynamic_rotate %176 by %c48_i32_58 dim 1 : vector<24x384xf32>, i32 -> vector<24x384xf32>
    %178 = vector.extract_strided_slice %177 {offsets = [0, 0], sizes = [16, 256], strides = [1, 1]} : vector<24x384xf32> to vector<16x256xf32>
    %c28 = arith.constant 28 : index
    %c0_59 = arith.constant 0 : index
    %179 = vector.load %arg2[%c28, %c0_59] : memref<49x256xf32, #tpu.memory_space<vmem>>, vector<1x256xf32>
    %180 = vector.broadcast %179 : vector<1x256xf32> to vector<16x256xf32>
    %181 = arith.mulf %178, %180 : vector<16x256xf32>
    %182 = arith.addf %175, %181 : vector<16x256xf32>
    %c32_i32_60 = arith.constant 32 : i32
    %183 = tpu.dynamic_rotate %176 by %c32_i32_60 dim 1 : vector<24x384xf32>, i32 -> vector<24x384xf32>
    %184 = vector.extract_strided_slice %183 {offsets = [0, 0], sizes = [16, 256], strides = [1, 1]} : vector<24x384xf32> to vector<16x256xf32>
    %c29 = arith.constant 29 : index
    %c0_61 = arith.constant 0 : index
    %185 = vector.load %arg2[%c29, %c0_61] : memref<49x256xf32, #tpu.memory_space<vmem>>, vector<1x256xf32>
    %186 = vector.broadcast %185 : vector<1x256xf32> to vector<16x256xf32>
    %187 = arith.mulf %184, %186 : vector<16x256xf32>
    %188 = arith.addf %182, %187 : vector<16x256xf32>
    %c16_i32_62 = arith.constant 16 : i32
    %189 = tpu.dynamic_rotate %176 by %c16_i32_62 dim 1 : vector<24x384xf32>, i32 -> vector<24x384xf32>
    %190 = vector.extract_strided_slice %189 {offsets = [0, 0], sizes = [16, 256], strides = [1, 1]} : vector<24x384xf32> to vector<16x256xf32>
    %c30 = arith.constant 30 : index
    %c0_63 = arith.constant 0 : index
    %191 = vector.load %arg2[%c30, %c0_63] : memref<49x256xf32, #tpu.memory_space<vmem>>, vector<1x256xf32>
    %192 = vector.broadcast %191 : vector<1x256xf32> to vector<16x256xf32>
    %193 = arith.mulf %190, %192 : vector<16x256xf32>
    %194 = arith.addf %188, %193 : vector<16x256xf32>
    %195 = vector.extract_strided_slice %176 {offsets = [0, 0], sizes = [16, 256], strides = [1, 1]} : vector<24x384xf32> to vector<16x256xf32>
    %c31 = arith.constant 31 : index
    %c0_64 = arith.constant 0 : index
    %196 = vector.load %arg2[%c31, %c0_64] : memref<49x256xf32, #tpu.memory_space<vmem>>, vector<1x256xf32>
    %197 = vector.broadcast %196 : vector<1x256xf32> to vector<16x256xf32>
    %198 = arith.mulf %195, %197 : vector<16x256xf32>
    %199 = arith.addf %194, %198 : vector<16x256xf32>
    %c368_i32_65 = arith.constant 368 : i32
    %200 = tpu.dynamic_rotate %176 by %c368_i32_65 dim 1 : vector<24x384xf32>, i32 -> vector<24x384xf32>
    %201 = vector.extract_strided_slice %200 {offsets = [0, 0], sizes = [16, 256], strides = [1, 1]} : vector<24x384xf32> to vector<16x256xf32>
    %c32 = arith.constant 32 : index
    %c0_66 = arith.constant 0 : index
    %202 = vector.load %arg2[%c32, %c0_66] : memref<49x256xf32, #tpu.memory_space<vmem>>, vector<1x256xf32>
    %203 = vector.broadcast %202 : vector<1x256xf32> to vector<16x256xf32>
    %204 = arith.mulf %201, %203 : vector<16x256xf32>
    %205 = arith.addf %199, %204 : vector<16x256xf32>
    %c352_i32_67 = arith.constant 352 : i32
    %206 = tpu.dynamic_rotate %176 by %c352_i32_67 dim 1 : vector<24x384xf32>, i32 -> vector<24x384xf32>
    %207 = vector.extract_strided_slice %206 {offsets = [0, 0], sizes = [16, 256], strides = [1, 1]} : vector<24x384xf32> to vector<16x256xf32>
    %c33 = arith.constant 33 : index
    %c0_68 = arith.constant 0 : index
    %208 = vector.load %arg2[%c33, %c0_68] : memref<49x256xf32, #tpu.memory_space<vmem>>, vector<1x256xf32>
    %209 = vector.broadcast %208 : vector<1x256xf32> to vector<16x256xf32>
    %210 = arith.mulf %207, %209 : vector<16x256xf32>
    %211 = arith.addf %205, %210 : vector<16x256xf32>
    %c336_i32_69 = arith.constant 336 : i32
    %212 = tpu.dynamic_rotate %176 by %c336_i32_69 dim 1 : vector<24x384xf32>, i32 -> vector<24x384xf32>
    %213 = vector.extract_strided_slice %212 {offsets = [0, 0], sizes = [16, 256], strides = [1, 1]} : vector<24x384xf32> to vector<16x256xf32>
    %c34 = arith.constant 34 : index
    %c0_70 = arith.constant 0 : index
    %214 = vector.load %arg2[%c34, %c0_70] : memref<49x256xf32, #tpu.memory_space<vmem>>, vector<1x256xf32>
    %215 = vector.broadcast %214 : vector<1x256xf32> to vector<16x256xf32>
    %216 = arith.mulf %213, %215 : vector<16x256xf32>
    %217 = arith.addf %211, %216 : vector<16x256xf32>
    %c22_i32 = arith.constant 22 : i32
    %218 = tpu.dynamic_rotate %7 by %c22_i32 dim 0 : vector<24x384xf32>, i32 -> vector<24x384xf32>
    %c48_i32_71 = arith.constant 48 : i32
    %219 = tpu.dynamic_rotate %218 by %c48_i32_71 dim 1 : vector<24x384xf32>, i32 -> vector<24x384xf32>
    %220 = vector.extract_strided_slice %219 {offsets = [0, 0], sizes = [16, 256], strides = [1, 1]} : vector<24x384xf32> to vector<16x256xf32>
    %c35 = arith.constant 35 : index
    %c0_72 = arith.constant 0 : index
    %221 = vector.load %arg2[%c35, %c0_72] : memref<49x256xf32, #tpu.memory_space<vmem>>, vector<1x256xf32>
    %222 = vector.broadcast %221 : vector<1x256xf32> to vector<16x256xf32>
    %223 = arith.mulf %220, %222 : vector<16x256xf32>
    %224 = arith.addf %217, %223 : vector<16x256xf32>
    %c32_i32_73 = arith.constant 32 : i32
    %225 = tpu.dynamic_rotate %218 by %c32_i32_73 dim 1 : vector<24x384xf32>, i32 -> vector<24x384xf32>
    %226 = vector.extract_strided_slice %225 {offsets = [0, 0], sizes = [16, 256], strides = [1, 1]} : vector<24x384xf32> to vector<16x256xf32>
    %c36 = arith.constant 36 : index
    %c0_74 = arith.constant 0 : index
    %227 = vector.load %arg2[%c36, %c0_74] : memref<49x256xf32, #tpu.memory_space<vmem>>, vector<1x256xf32>
    %228 = vector.broadcast %227 : vector<1x256xf32> to vector<16x256xf32>
    %229 = arith.mulf %226, %228 : vector<16x256xf32>
    %230 = arith.addf %224, %229 : vector<16x256xf32>
    %c16_i32_75 = arith.constant 16 : i32
    %231 = tpu.dynamic_rotate %218 by %c16_i32_75 dim 1 : vector<24x384xf32>, i32 -> vector<24x384xf32>
    %232 = vector.extract_strided_slice %231 {offsets = [0, 0], sizes = [16, 256], strides = [1, 1]} : vector<24x384xf32> to vector<16x256xf32>
    %c37 = arith.constant 37 : index
    %c0_76 = arith.constant 0 : index
    %233 = vector.load %arg2[%c37, %c0_76] : memref<49x256xf32, #tpu.memory_space<vmem>>, vector<1x256xf32>
    %234 = vector.broadcast %233 : vector<1x256xf32> to vector<16x256xf32>
    %235 = arith.mulf %232, %234 : vector<16x256xf32>
    %236 = arith.addf %230, %235 : vector<16x256xf32>
    %237 = vector.extract_strided_slice %218 {offsets = [0, 0], sizes = [16, 256], strides = [1, 1]} : vector<24x384xf32> to vector<16x256xf32>
    %c38 = arith.constant 38 : index
    %c0_77 = arith.constant 0 : index
    %238 = vector.load %arg2[%c38, %c0_77] : memref<49x256xf32, #tpu.memory_space<vmem>>, vector<1x256xf32>
    %239 = vector.broadcast %238 : vector<1x256xf32> to vector<16x256xf32>
    %240 = arith.mulf %237, %239 : vector<16x256xf32>
    %241 = arith.addf %236, %240 : vector<16x256xf32>
    %c368_i32_78 = arith.constant 368 : i32
    %242 = tpu.dynamic_rotate %218 by %c368_i32_78 dim 1 : vector<24x384xf32>, i32 -> vector<24x384xf32>
    %243 = vector.extract_strided_slice %242 {offsets = [0, 0], sizes = [16, 256], strides = [1, 1]} : vector<24x384xf32> to vector<16x256xf32>
    %c39 = arith.constant 39 : index
    %c0_79 = arith.constant 0 : index
    %244 = vector.load %arg2[%c39, %c0_79] : memref<49x256xf32, #tpu.memory_space<vmem>>, vector<1x256xf32>
    %245 = vector.broadcast %244 : vector<1x256xf32> to vector<16x256xf32>
    %246 = arith.mulf %243, %245 : vector<16x256xf32>
    %247 = arith.addf %241, %246 : vector<16x256xf32>
    %c352_i32_80 = arith.constant 352 : i32
    %248 = tpu.dynamic_rotate %218 by %c352_i32_80 dim 1 : vector<24x384xf32>, i32 -> vector<24x384xf32>
    %249 = vector.extract_strided_slice %248 {offsets = [0, 0], sizes = [16, 256], strides = [1, 1]} : vector<24x384xf32> to vector<16x256xf32>
    %c40 = arith.constant 40 : index
    %c0_81 = arith.constant 0 : index
    %250 = vector.load %arg2[%c40, %c0_81] : memref<49x256xf32, #tpu.memory_space<vmem>>, vector<1x256xf32>
    %251 = vector.broadcast %250 : vector<1x256xf32> to vector<16x256xf32>
    %252 = arith.mulf %249, %251 : vector<16x256xf32>
    %253 = arith.addf %247, %252 : vector<16x256xf32>
    %c336_i32_82 = arith.constant 336 : i32
    %254 = tpu.dynamic_rotate %218 by %c336_i32_82 dim 1 : vector<24x384xf32>, i32 -> vector<24x384xf32>
    %255 = vector.extract_strided_slice %254 {offsets = [0, 0], sizes = [16, 256], strides = [1, 1]} : vector<24x384xf32> to vector<16x256xf32>
    %c41 = arith.constant 41 : index
    %c0_83 = arith.constant 0 : index
    %256 = vector.load %arg2[%c41, %c0_83] : memref<49x256xf32, #tpu.memory_space<vmem>>, vector<1x256xf32>
    %257 = vector.broadcast %256 : vector<1x256xf32> to vector<16x256xf32>
    %258 = arith.mulf %255, %257 : vector<16x256xf32>
    %259 = arith.addf %253, %258 : vector<16x256xf32>
    %c21_i32 = arith.constant 21 : i32
    %260 = tpu.dynamic_rotate %7 by %c21_i32 dim 0 : vector<24x384xf32>, i32 -> vector<24x384xf32>
    %c48_i32_84 = arith.constant 48 : i32
    %261 = tpu.dynamic_rotate %260 by %c48_i32_84 dim 1 : vector<24x384xf32>, i32 -> vector<24x384xf32>
    %262 = vector.extract_strided_slice %261 {offsets = [0, 0], sizes = [16, 256], strides = [1, 1]} : vector<24x384xf32> to vector<16x256xf32>
    %c42 = arith.constant 42 : index
    %c0_85 = arith.constant 0 : index
    %263 = vector.load %arg2[%c42, %c0_85] : memref<49x256xf32, #tpu.memory_space<vmem>>, vector<1x256xf32>
    %264 = vector.broadcast %263 : vector<1x256xf32> to vector<16x256xf32>
    %265 = arith.mulf %262, %264 : vector<16x256xf32>
    %266 = arith.addf %259, %265 : vector<16x256xf32>
    %c32_i32_86 = arith.constant 32 : i32
    %267 = tpu.dynamic_rotate %260 by %c32_i32_86 dim 1 : vector<24x384xf32>, i32 -> vector<24x384xf32>
    %268 = vector.extract_strided_slice %267 {offsets = [0, 0], sizes = [16, 256], strides = [1, 1]} : vector<24x384xf32> to vector<16x256xf32>
    %c43 = arith.constant 43 : index
    %c0_87 = arith.constant 0 : index
    %269 = vector.load %arg2[%c43, %c0_87] : memref<49x256xf32, #tpu.memory_space<vmem>>, vector<1x256xf32>
    %270 = vector.broadcast %269 : vector<1x256xf32> to vector<16x256xf32>
    %271 = arith.mulf %268, %270 : vector<16x256xf32>
    %272 = arith.addf %266, %271 : vector<16x256xf32>
    %c16_i32_88 = arith.constant 16 : i32
    %273 = tpu.dynamic_rotate %260 by %c16_i32_88 dim 1 : vector<24x384xf32>, i32 -> vector<24x384xf32>
    %274 = vector.extract_strided_slice %273 {offsets = [0, 0], sizes = [16, 256], strides = [1, 1]} : vector<24x384xf32> to vector<16x256xf32>
    %c44 = arith.constant 44 : index
    %c0_89 = arith.constant 0 : index
    %275 = vector.load %arg2[%c44, %c0_89] : memref<49x256xf32, #tpu.memory_space<vmem>>, vector<1x256xf32>
    %276 = vector.broadcast %275 : vector<1x256xf32> to vector<16x256xf32>
    %277 = arith.mulf %274, %276 : vector<16x256xf32>
    %278 = arith.addf %272, %277 : vector<16x256xf32>
    %279 = vector.extract_strided_slice %260 {offsets = [0, 0], sizes = [16, 256], strides = [1, 1]} : vector<24x384xf32> to vector<16x256xf32>
    %c45 = arith.constant 45 : index
    %c0_90 = arith.constant 0 : index
    %280 = vector.load %arg2[%c45, %c0_90] : memref<49x256xf32, #tpu.memory_space<vmem>>, vector<1x256xf32>
    %281 = vector.broadcast %280 : vector<1x256xf32> to vector<16x256xf32>
    %282 = arith.mulf %279, %281 : vector<16x256xf32>
    %283 = arith.addf %278, %282 : vector<16x256xf32>
    %c368_i32_91 = arith.constant 368 : i32
    %284 = tpu.dynamic_rotate %260 by %c368_i32_91 dim 1 : vector<24x384xf32>, i32 -> vector<24x384xf32>
    %285 = vector.extract_strided_slice %284 {offsets = [0, 0], sizes = [16, 256], strides = [1, 1]} : vector<24x384xf32> to vector<16x256xf32>
    %c46 = arith.constant 46 : index
    %c0_92 = arith.constant 0 : index
    %286 = vector.load %arg2[%c46, %c0_92] : memref<49x256xf32, #tpu.memory_space<vmem>>, vector<1x256xf32>
    %287 = vector.broadcast %286 : vector<1x256xf32> to vector<16x256xf32>
    %288 = arith.mulf %285, %287 : vector<16x256xf32>
    %289 = arith.addf %283, %288 : vector<16x256xf32>
    %c352_i32_93 = arith.constant 352 : i32
    %290 = tpu.dynamic_rotate %260 by %c352_i32_93 dim 1 : vector<24x384xf32>, i32 -> vector<24x384xf32>
    %291 = vector.extract_strided_slice %290 {offsets = [0, 0], sizes = [16, 256], strides = [1, 1]} : vector<24x384xf32> to vector<16x256xf32>
    %c47 = arith.constant 47 : index
    %c0_94 = arith.constant 0 : index
    %292 = vector.load %arg2[%c47, %c0_94] : memref<49x256xf32, #tpu.memory_space<vmem>>, vector<1x256xf32>
    %293 = vector.broadcast %292 : vector<1x256xf32> to vector<16x256xf32>
    %294 = arith.mulf %291, %293 : vector<16x256xf32>
    %295 = arith.addf %289, %294 : vector<16x256xf32>
    %c336_i32_95 = arith.constant 336 : i32
    %296 = tpu.dynamic_rotate %260 by %c336_i32_95 dim 1 : vector<24x384xf32>, i32 -> vector<24x384xf32>
    %297 = vector.extract_strided_slice %296 {offsets = [0, 0], sizes = [16, 256], strides = [1, 1]} : vector<24x384xf32> to vector<16x256xf32>
    %c48 = arith.constant 48 : index
    %c0_96 = arith.constant 0 : index
    %298 = vector.load %arg2[%c48, %c0_96] : memref<49x256xf32, #tpu.memory_space<vmem>>, vector<1x256xf32>
    %299 = vector.broadcast %298 : vector<1x256xf32> to vector<16x256xf32>
    %300 = arith.mulf %297, %299 : vector<16x256xf32>
    %301 = arith.addf %295, %300 : vector<16x256xf32>
    %c0_97 = arith.constant 0 : index
    %c0_98 = arith.constant 0 : index
    %302 = vector.load %arg3[%c0_97, %c0_98] : memref<1x256xf32, #tpu.memory_space<vmem>>, vector<1x256xf32>
    %303 = vector.broadcast %302 : vector<1x256xf32> to vector<16x256xf32>
    %304 = arith.addf %301, %303 : vector<16x256xf32>
    %c0_99 = arith.constant 0 : index
    %c0_100 = arith.constant 0 : index
    %c0_101 = arith.constant 0 : index
    %305 = vector.load %arg4[%c0_99, %c0_100, %c0_101] : memref<1x16x256xf32, #tpu.memory_space<vmem>>, vector<1x16x256xf32>
    %306 = vector.shape_cast %305 : vector<1x16x256xf32> to vector<16x256xf32>
    %307 = vector.shape_cast %304 : vector<16x256xf32> to vector<1x16x256xf32>
    tpu.vector_store %arg4[%c0_99, %c0_100, %c0_101], %307 {strides = array<i32>} : memref<1x16x256xf32, #tpu.memory_space<vmem>>, vector<1x16x256xf32>,
    return
  }
  func.func @transform_0(%arg0: i32) -> (i32, i32, i32) {
    %c0_i32 = arith.constant 0 : i32
    %c0_i32_0 = arith.constant 0 : i32
    %c0_i32_1 = arith.constant 0 : i32
    return %arg0, %c0_i32, %c0_i32_0 : i32, i32, i32
  }
  func.func @transform_1(%arg0: i32) -> (i32, i32) {
    %c0_i32 = arith.constant 0 : i32
    %c0_i32_0 = arith.constant 0 : i32
    %c0_i32_1 = arith.constant 0 : i32
    return %c0_i32, %c0_i32_0 : i32, i32
  }
  func.func @transform_2(%arg0: i32) -> (i32, i32) {
    %c0_i32 = arith.constant 0 : i32
    %c0_i32_0 = arith.constant 0 : i32
    %c0_i32_1 = arith.constant 0 : i32
    return %c0_i32, %c0_i32_0 : i32, i32
  }
  func.func @transform_3(%arg0: i32) -> (i32, i32, i32) {
    %c0_i32 = arith.constant 0 : i32
    %c0_i32_0 = arith.constant 0 : i32
    %c0_i32_1 = arith.constant 0 : i32
    return %arg0, %c0_i32, %c0_i32_0 : i32, i32, i32
  }
}

</mosaic_0001>

<llo_original>
// kernel: tpu_custom_call.1
$region0: #{tpu_custom_call.1}
  #allocation0 [shape = 'u32[]', space=smem, size = 0x4, offset = 0x4, fixed_abs, tag = 'smem constant byte address 0x4 - core index']
  #allocation1 [shape = 'u32[144,128]{1,0:T(1,128)}', space=vmem, size = 0x12000, scoped, tag = 'internal scratch']
  #allocation2 [shape = 'f32[24,384]{1,0:T(8,128)}', space=vmem, size = 0x9000, scoped, tag = 'scratch operand']
  %s0 = inlined_call_operand.hbm [shape: f32[2,16,256], index: 0, kind: input, shape index: {}]
  %s1 = inlined_call_operand.hbm [shape: f32[49,256], index: 1, kind: input, shape index: {}]
  %s2 = inlined_call_operand.vmem [shape: f32[1,256], index: 2, kind: input, shape index: {}]
  %s3 = inlined_call_operand.hbm [shape: f32[2,16,256], index: 3, kind: output, shape index: {}]
  %s4 = sld [smem:[#allocation0]]
  $region53: #{tpu_custom_call.1} parent=0
    _
  %s6 = ssub.s32 1, %s4
  %s7 = scalar_select 0, %s6, %s4
  $region1: #{tpu_custom_call.1} parent=0
    #allocation3 [shape = 'u8[32768]{0}', space=vmem, size = 0x8000, scoped, tag = 'input window, operand 0']
    #allocation4 [shape = 's32[2]{0}', space=sflag, size = 0x8, scoped, tag = 'scoped memory for tpu_custom_call.1']
    #allocation5 [shape = 's32[2]{0}', space=sflag, size = 0x8, scoped, tag = 'scoped memory for tpu_custom_call.1']
    #allocation6 [shape = 'u8[57344]{0}', space=vmem, size = 0xe000, scoped, tag = 'input window, operand 1, single buffered']
    #allocation7 [shape = 's32[1]{0}', space=sflag, size = 0x4, scoped, tag = 'scoped memory for tpu_custom_call.1']
    #allocation8 [shape = 'u8[32768]{0}', space=vmem, size = 0x8000, scoped, tag = 'output window, operand 0']
    %8 = vsyncpa [#allocation4], 0
    %s9 = scalar_lea.sflag [#allocation4], 1
    %10 = vsyncpa %s9, 0
    %11 = vsyncpa [#allocation7], 0
    %12 = vsyncpa [#allocation5], 0
    %s13 = scalar_lea.sflag [#allocation5], 1
    %14 = vsyncpa %s13, 0
    loop: start=0, step=1, limit=4
    $region2: #{tpu_custom_call.1} parent=1 // loop_pre_header
      _
    $region3: #{tpu_custom_call.1} parent=1 // loop_header
      %s16 = sphi 0, %s20
      %p17 = scmp.ge.s32.totalorder %s16, 4
      %s26 = sphi 0, %s28
      %s29 = sphi 0, %s26
      %s30 = sphi 0, %s29
      %s46 = sphi 0, %s30
      %s50 = sphi 0, %s50
      %s52 = sphi 0, %s50
      %s53 = sphi 0, %s52
      %s67 = sphi 0, %s53
      %s71 = sphi 0, %s71
      %s73 = sphi 0, %s71
      %s74 = sphi 0, %s73
      %s88 = sphi 0, %s74
      %s94 = sphi 0, %s96
      %s97 = sphi 0, %s94
      %s98 = sphi 0, %s97
      %s114 = sphi 0, %s98
    $region4: #{tpu_custom_call.1} parent=1 // loop_header_branch
      %19 = sbr.rel (%p17) target = $region8
    $region5: #{tpu_custom_call.1} parent=1 // loop_body
      %s21 = ssub.s32 %s16, 1
      %s22 = ssub.s32 %s16, 2
      %s23 = sadd.s32 %s16, 1
      %s24 = ssub.s32 %s16, %s23
      %p25 = scmp.eq.s32.totalorder %s24, 0
      %s27 = sadd.s32 %s26, 1
      %s28 = scalar_select %p25, %s26, %s27
      %p31 = pneg %p25
      %p32 = scmp.eq.s32.totalorder %s16, 1
      %p33 = por %p31, %p32
      %p34 = scmp.ne.s32.totalorder %s26, %s29
      %p35 = scmp.eq.s32.totalorder %s16, 0
      %p36 = por %p34, %p35
      %p37 = scmp.ne.s32.totalorder %s26, %s29
      %p38 = scmp.eq.s32.totalorder %s21, 1
      %p39 = por %p37, %p38
      %p40 = scmp.ne.s32.totalorder %s29, %s30
      %p41 = scmp.eq.s32.totalorder %s21, 0
      %p42 = por %p40, %p41
      %p43 = scmp.ne.s32.totalorder %s29, %s30
      %p44 = scmp.eq.s32.totalorder %s22, 1
      %p45 = por %p43, %p44
      %p47 = scmp.ne.s32.totalorder %s30, %s46
      %p48 = scmp.eq.s32.totalorder %s22, 0
      %p49 = por %p47, %p48
      %s51 = sadd.s32 %s50, 1
      %p54 = scmp.eq.s32.totalorder %s16, 1
      %p55 = scmp.ne.s32.totalorder %s50, %s52
      %p56 = scmp.eq.s32.totalorder %s16, 0
      %p57 = por %p55, %p56
      %p58 = scmp.ne.s32.totalorder %s50, %s52
      %p59 = scmp.eq.s32.totalorder %s21, 1
      %p60 = por %p58, %p59
      %p61 = scmp.ne.s32.totalorder %s52, %s53
      %p62 = scmp.eq.s32.totalorder %s21, 0
      %p63 = por %p61, %p62
      %p64 = scmp.ne.s32.totalorder %s52, %s53
      %p65 = scmp.eq.s32.totalorder %s22, 1
      %p66 = por %p64, %p65
      %p68 = scmp.ne.s32.totalorder %s53, %s67
      %p69 = scmp.eq.s32.totalorder %s22, 0
      %p70 = por %p68, %p69
      %s72 = sadd.s32 %s71, 1
      %p75 = scmp.eq.s32.totalorder %s16, 1
      %p76 = scmp.ne.s32.totalorder %s71, %s73
      %p77 = scmp.eq.s32.totalorder %s16, 0
      %p78 = por %p76, %p77
      %p79 = scmp.ne.s32.totalorder %s71, %s73
      %p80 = scmp.eq.s32.totalorder %s21, 1
      %p81 = por %p79, %p80
      %p82 = scmp.ne.s32.totalorder %s73, %s74
      %p83 = scmp.eq.s32.totalorder %s21, 0
      %p84 = por %p82, %p83
      %p85 = scmp.ne.s32.totalorder %s73, %s74
      %p86 = scmp.eq.s32.totalorder %s22, 1
      %p87 = por %p85, %p86
      %p89 = scmp.ne.s32.totalorder %s74, %s88
      %p90 = scmp.eq.s32.totalorder %s22, 0
      %p91 = por %p89, %p90
      %s92 = ssub.s32 %s16, %s23
      %p93 = scmp.eq.s32.totalorder %s92, 0
      %s95 = sadd.s32 %s94, 1
      %s96 = scalar_select %p93, %s94, %s95
      %p99 = pneg %p93
      %p100 = scmp.eq.s32.totalorder %s16, 1
      %p101 = por %p99, %p100
      %p102 = scmp.ne.s32.totalorder %s94, %s97
      %p103 = scmp.eq.s32.totalorder %s16, 0
      %p104 = por %p102, %p103
      %p105 = scmp.ne.s32.totalorder %s94, %s97
      %p106 = scmp.eq.s32.totalorder %s21, 1
      %p107 = por %p105, %p106
      %p108 = scmp.ne.s32.totalorder %s97, %s98
      %p109 = scmp.eq.s32.totalorder %s21, 0
      %p110 = por %p108, %p109
      %p111 = scmp.ne.s32.totalorder %s97, %s98
      %p112 = scmp.eq.s32.totalorder %s22, 1
      %p113 = por %p111, %p112
      %p115 = scmp.ne.s32.totalorder %s98, %s114
      %p116 = scmp.eq.s32.totalorder %s22, 0
      %p117 = por %p115, %p116
      %p118 = scmp.le.s32.totalorder 1, %s16
      %p119 = scmp.lt.s32.totalorder %s16, 3
      %p120 = pnand %p118, %p119
      %p121 = pneg %p120
      // Predicated region
      $region9: #{tpu_custom_call.1} parent=5 // pred_check
        _
      $region10: #{tpu_custom_call.1} parent=5 // pred_check_branch
        %123 = sbr.rel (%p120) target = $region12
      $region11: #{tpu_custom_call.1} parent=5 // pred_region
        %s124 = ssub.s32 %s16, 1
        // Predicated region
        $region13: #{tpu_custom_call.1} parent=11 // pred_check
          %p125 = pneg %p63
        $region14: #{tpu_custom_call.1} parent=11 // pred_check_branch
          %127 = sbr.rel (%p125) target = $region16
        $region15: #{tpu_custom_call.1} parent=11 // pred_region
          %s129 = ssub.s32 1792, 1792
          %130 = vsyncadd [#allocation7], %s129
          %s131 = sshll.u32 [#allocation6], 4
          %s132 = int_to_ptr.vmem [resolvable:$true] %s131
          %137 = dma.hbm_to_vmem [thread:$0]  %s1, 1792, %s132, [#allocation7], 256, 256, 16
        $region16: #{tpu_custom_call.1} parent=11 // pred_fallthru
          _
        // Predicated region
        $region17: #{tpu_custom_call.1} parent=11 // pred_check
          %p138 = pneg %p84
        $region18: #{tpu_custom_call.1} parent=11 // pred_check_branch
          %140 = sbr.rel (%p138) target = $region20
        $region19: #{tpu_custom_call.1} parent=11 // pred_region
          _
        $region20: #{tpu_custom_call.1} parent=11 // pred_fallthru
          _
      $region12: #{tpu_custom_call.1} parent=5 // pred_fallthru
        _
      %p141 = scmp.lt.s32.totalorder %s16, 2
      // Predicated region
      $region21: #{tpu_custom_call.1} parent=5 // pred_check
        %p142 = pneg %p141
      $region22: #{tpu_custom_call.1} parent=5 // pred_check_branch
        %144 = sbr.rel (%p142) target = $region24
      $region23: #{tpu_custom_call.1} parent=5 // pred_region
        // Predicated region
        $region25: #{tpu_custom_call.1} parent=23 // pred_check
          %p145 = pneg %p36
        $region26: #{tpu_custom_call.1} parent=23 // pred_check_branch
          %147 = sbr.rel (%p145) target = $region28
        $region27: #{tpu_custom_call.1} parent=23 // pred_region
          %s148 = sand.u32 %s26, 1
          %s149 = scalar_lea.sflag [#allocation4], %s148
          %s150 = sand.u32 %s26, 1
          %s151 = smul.addr %s150, 32
          %s152 = scalar_lea.vmem [#allocation3], %s151
          %s154 = ssub.s32 512, 512
          %155 = vsyncadd %s149, %s154
          %s156 = smul.addr %s16, 4
          %s157 = smul.addr %s156, 128
          %s158 = scalar_lea.hbm %s0, %s157
          %s159 = sshll.u32 %s152, 4
          %s160 = int_to_ptr.vmem [resolvable:$true] %s159
          %165 = dma.hbm_to_vmem [thread:$0]  %s158, 512, %s160, %s149, 256, 256, 16
        $region28: #{tpu_custom_call.1} parent=23 // pred_fallthru
          _
      $region24: #{tpu_custom_call.1} parent=5 // pred_fallthru
        _
      %p166 = scmp.le.s32.totalorder 1, %s16
      %p167 = scmp.lt.s32.totalorder %s16, 3
      %p168 = pnand %p166, %p167
      %p169 = pneg %p168
      // Predicated region
      $region29: #{tpu_custom_call.1} parent=5 // pred_check
        _
      $region30: #{tpu_custom_call.1} parent=5 // pred_check_branch
        %171 = sbr.rel (%p168) target = $region32
      $region31: #{tpu_custom_call.1} parent=5 // pred_region
        %s172 = ssub.s32 %s16, 1
        %s173 = sand.u32 %s29, 1
        %s174 = scalar_lea.sflag [#allocation4], %s173
        %s175 = sand.u32 %s29, 1
        %s176 = smul.addr %s175, 32
        %s177 = scalar_lea.vmem [#allocation3], %s176
        // Predicated region
        $region33: #{tpu_custom_call.1} parent=31 // pred_check
          %p178 = pneg %p42
        $region34: #{tpu_custom_call.1} parent=31 // pred_check_branch
          %180 = sbr.rel (%p178) target = $region36
        $region35: #{tpu_custom_call.1} parent=31 // pred_region
          %181 = dma.done %s174, 512
        $region36: #{tpu_custom_call.1} parent=31 // pred_fallthru
          _
        // Predicated region
        $region37: #{tpu_custom_call.1} parent=31 // pred_check
          %p182 = pneg %p63
        $region38: #{tpu_custom_call.1} parent=31 // pred_check_branch
          %184 = sbr.rel (%p182) target = $region40
        $region39: #{tpu_custom_call.1} parent=31 // pred_region
          %185 = dma.done [#allocation7], 1792
        $region40: #{tpu_custom_call.1} parent=31 // pred_fallthru
          _
        %s186 = sand.u32 %s29, 1
        %s187 = scalar_lea.sflag [#allocation4], %s186
        %s188 = sand.u32 %s29, 1
        %s189 = smul.addr %s188, 32
        %s190 = scalar_lea.vmem [#allocation3], %s189
        %p191 = pneg %p42
        %p192 = pneg %p39
        %p193 = pneg %p63
        %p194 = pneg %p60
        %p195 = pneg %p84
        %p196 = pneg %p81
        %p197 = pneg %p110
        %p198 = pneg %p107
        %s199 = sand.u32 %s97, 1
        %s200 = scalar_lea.sflag [#allocation5], %s199
        %s201 = sand.u32 %s97, 1
        %s202 = smul.addr %s201, 32
        %s203 = scalar_lea.vmem [#allocation8], %s202
        %204 = vst [vmem:[#allocation2 + $0x30] sm:$0xff] 0.0
        %205 = vst [vmem:[#allocation2 + $0x38] sm:$0xff] 0.0
        %206 = vst [vmem:[#allocation2 + $0x40] sm:$0xff] 0.0
        %207 = vst [vmem:[#allocation2 + $0x10] sm:$0xff] 0.0
        %208 = vst [vmem:[#allocation2 + $0x28] sm:$0xff] 0.0
        %209 = vst [vmem:[#allocation2 + $0x40] sm:$0xff] 0.0
        %v210 = vld [vmem:[%s177] sm:$0xff]
        %v211 = vld [vmem:[%s177 + $0x8] sm:$0xff]
        %v212 = vld [vmem:[%s177 + $0x10] sm:$0xff]
        %v213 = vld [vmem:[%s177 + $0x18] sm:$0xff]
        %214 = vst [vmem:[#allocation2] sm:$0xff] %v210
        %215 = vst [vmem:[#allocation2 + $0x8] sm:$0xff] %v211
        %216 = vst [vmem:[#allocation2 + $0x18] sm:$0xff] %v212
        %217 = vst [vmem:[#allocation2 + $0x20] sm:$0xff] %v213
        %v218 = vld [vmem:[#allocation2] sm:$0xff]
        %v219 = vld [vmem:[#allocation2 + $0x8] sm:$0xff]
        %v220 = vld [vmem:[#allocation2 + $0x10] sm:$0xff]
        %v221 = vld [vmem:[#allocation2 + $0x18] sm:$0xff]
        %v222 = vld [vmem:[#allocation2 + $0x20] sm:$0xff]
        %v223 = vld [vmem:[#allocation2 + $0x28] sm:$0xff]
        %v224 = vld [vmem:[#allocation2 + $0x30] sm:$0xff]
        %v225 = vld [vmem:[#allocation2 + $0x38] sm:$0xff]
        %v226 = vld [vmem:[#allocation2 + $0x40] sm:$0xff]
        %v227 = vrot.slane %v218, 5
        %v228 = vrot.slane %v219, 5
        %v229 = vrot.slane %v220, 5
        %v230 = vrot.slane %v221, 5
        %v231 = vrot.slane %v222, 5
        %v232 = vrot.slane %v223, 5
        %v233 = vrot.slane %v224, 5
        %v234 = vrot.slane %v225, 5
        %v235 = vrot.slane %v226, 5
        %v236 = vlaneseq
        %v237 = vshrl.u32 %v236, 7
        %vm238 = vcmp.lt.s32.totalorder %v237, 3
        %v239 = vsel %vm238, %v227, %v230
        %v240 = vsel %vm238, %v228, %v231
        %v241 = vsel %vm238, %v229, %v232
        %v242 = vsel %vm238, %v233, %v227
        %v243 = vsel %vm238, %v234, %v228
        %v244 = vsel %vm238, %v235, %v229
        %245 = vrot.lane.b32.xlu0 %v242, 48
        %v246 = vpop.permute.xlu0 %245
        %247 = vrot.lane.b32.xlu0 %v239, 48
        %v248 = vpop.permute.xlu0 %247
        %249 = vrot.lane.b32.xlu0 %v243, 48
        %v250 = vpop.permute.xlu0 %249
        %251 = vrot.lane.b32.xlu0 %v240, 48
        %v252 = vpop.permute.xlu0 %251
        %253 = vrot.lane.b32.xlu0 %v244, 48
        %v254 = vpop.permute.xlu0 %253
        %255 = vrot.lane.b32.xlu0 %v241, 48
        %v256 = vpop.permute.xlu0 %255
        %v257 = vlaneseq
        %v258 = vand.u32 %v257, 127
        %vm259 = vcmp.lt.s32.totalorder %v258, 48
        %v260 = vsel %vm259, %v246, %v250
        %v261 = vsel %vm259, %v248, %v252
        %v262 = vsel %vm259, %v254, %v246
        %v263 = vsel %vm259, %v256, %v248
        %v264 = vld [vmem:[#allocation6] ss:$8 sm:$0x3]
        %v266 = vlaneseq
        %v267 = vshrl.u32 %v266, 7
        %v268 = vsub.s32 0, %v267
        %v269 = vrot.slane %v264, %v268
        %v270 = vlaneseq
        %v271 = vshrl.u32 %v270, 7
        %v272 = vsub.s32 1, %v271
        %v273 = vrot.slane %v264, %v272
        %v276 = vmul.f32 %v262, %v269
        %v277 = vmul.f32 %v260, %v273
        %v278 = vmul.f32 %v263, %v269
        %v279 = vmul.f32 %v261, %v273
        %v280 = vadd.f32 %v276, 0.0
        %v281 = vadd.f32 %v277, 0.0
        %v282 = vadd.f32 %v278, 0.0
        %v283 = vadd.f32 %v279, 0.0
        %284 = vrot.lane.b32.xlu0 %v242, 32
        %v285 = vpop.permute.xlu0 %284
        %286 = vrot.lane.b32.xlu0 %v239, 32
        %v287 = vpop.permute.xlu0 %286
        %288 = vrot.lane.b32.xlu0 %v243, 32
        %v289 = vpop.permute.xlu0 %288
        %290 = vrot.lane.b32.xlu0 %v240, 32
        %v291 = vpop.permute.xlu0 %290
        %292 = vrot.lane.b32.xlu0 %v244, 32
        %v293 = vpop.permute.xlu0 %292
        %294 = vrot.lane.b32.xlu0 %v241, 32
        %v295 = vpop.permute.xlu0 %294
        %vm296 = vcmp.lt.s32.totalorder %v258, 32
        %v297 = vsel %vm296, %v285, %v289
        %v298 = vsel %vm296, %v287, %v291
        %v299 = vsel %vm296, %v293, %v285
        %v300 = vsel %vm296, %v295, %v287
        %s301 = scalar_lea.vmem [#allocation6], 1
        %v302 = vld [vmem:[%s301] ss:$8 sm:$0x3]
        %v304 = vlaneseq
        %v305 = vshrl.u32 %v304, 7
        %v306 = vsub.s32 0, %v305
        %v307 = vrot.slane %v302, %v306
        %v308 = vlaneseq
        %v309 = vshrl.u32 %v308, 7
        %v310 = vsub.s32 1, %v309
        %v311 = vrot.slane %v302, %v310
        %v314 = vmul.f32 %v299, %v307
        %v315 = vmul.f32 %v297, %v311
        %v316 = vmul.f32 %v300, %v307
        %v317 = vmul.f32 %v298, %v311
        %v318 = vadd.f32 %v280, %v314
        %v319 = vadd.f32 %v281, %v315
        %v320 = vadd.f32 %v282, %v316
        %v321 = vadd.f32 %v283, %v317
        %322 = vrot.lane.b32.xlu0 %v242, 16
        %v323 = vpop.permute.xlu0 %322
        %324 = vrot.lane.b32.xlu0 %v239, 16
        %v325 = vpop.permute.xlu0 %324
        %326 = vrot.lane.b32.xlu0 %v243, 16
        %v327 = vpop.permute.xlu0 %326
        %328 = vrot.lane.b32.xlu0 %v240, 16
        %v329 = vpop.permute.xlu0 %328
        %330 = vrot.lane.b32.xlu0 %v244, 16
        %v331 = vpop.permute.xlu0 %330
        %332 = vrot.lane.b32.xlu0 %v241, 16
        %v333 = vpop.permute.xlu0 %332
        %vm334 = vcmp.lt.s32.totalorder %v258, 16
        %v335 = vsel %vm334, %v323, %v327
        %v336 = vsel %vm334, %v325, %v329
        %v337 = vsel %vm334, %v331, %v323
        %v338 = vsel %vm334, %v333, %v325
        %s339 = scalar_lea.vmem [#allocation6], 2
        %v340 = vld [vmem:[%s339] ss:$8 sm:$0x3]
        %v342 = vlaneseq
        %v343 = vshrl.u32 %v342, 7
        %v344 = vsub.s32 0, %v343
        %v345 = vrot.slane %v340, %v344
        %v346 = vlaneseq
        %v347 = vshrl.u32 %v346, 7
        %v348 = vsub.s32 1, %v347
        %v349 = vrot.slane %v340, %v348
        %v352 = vmul.f32 %v337, %v345
        %v353 = vmul.f32 %v335, %v349
        %v354 = vmul.f32 %v338, %v345
        %v355 = vmul.f32 %v336, %v349
        %v356 = vadd.f32 %v318, %v352
        %v357 = vadd.f32 %v319, %v353
        %v358 = vadd.f32 %v320, %v354
        %v359 = vadd.f32 %v321, %v355
        %s360 = scalar_lea.vmem [#allocation6], 3
        %v361 = vld [vmem:[%s360] ss:$8 sm:$0x3]
        %v363 = vlaneseq
        %v364 = vshrl.u32 %v363, 7
        %v365 = vsub.s32 0, %v364
        %v366 = vrot.slane %v361, %v365
        %v367 = vlaneseq
        %v368 = vshrl.u32 %v367, 7
        %v369 = vsub.s32 1, %v368
        %v370 = vrot.slane %v361, %v369
        %v373 = vmul.f32 %v242, %v366
        %v374 = vmul.f32 %v243, %v370
        %v375 = vmul.f32 %v239, %v366
        %v376 = vmul.f32 %v240, %v370
        %v377 = vadd.f32 %v356, %v373
        %v378 = vadd.f32 %v357, %v374
        %v379 = vadd.f32 %v358, %v375
        %v380 = vadd.f32 %v359, %v376
        %381 = vrot.lane.b32.xlu0 %v242, 112
        %v382 = vpop.permute.xlu0 %381
        %383 = vrot.lane.b32.xlu0 %v239, 112
        %v384 = vpop.permute.xlu0 %383
        %385 = vrot.lane.b32.xlu0 %v243, 112
        %v386 = vpop.permute.xlu0 %385
        %387 = vrot.lane.b32.xlu0 %v240, 112
        %v388 = vpop.permute.xlu0 %387
        %389 = vrot.lane.b32.xlu0 %v244, 112
        %v390 = vpop.permute.xlu0 %389
        %391 = vrot.lane.b32.xlu0 %v241, 112
        %v392 = vpop.permute.xlu0 %391
        %vm393 = vcmp.lt.s32.totalorder %v258, 112
        %v394 = vsel %vm393, %v386, %v390
        %v395 = vsel %vm393, %v388, %v392
        %v396 = vsel %vm393, %v382, %v386
        %v397 = vsel %vm393, %v384, %v388
        %s398 = scalar_lea.vmem [#allocation6], 4
        %v399 = vld [vmem:[%s398] ss:$8 sm:$0x3]
        %v401 = vlaneseq
        %v402 = vshrl.u32 %v401, 7
        %v403 = vsub.s32 0, %v402
        %v404 = vrot.slane %v399, %v403
        %v405 = vlaneseq
        %v406 = vshrl.u32 %v405, 7
        %v407 = vsub.s32 1, %v406
        %v408 = vrot.slane %v399, %v407
        %v411 = vmul.f32 %v396, %v404
        %v412 = vmul.f32 %v394, %v408
        %v413 = vmul.f32 %v397, %v404
        %v414 = vmul.f32 %v395, %v408
        %v415 = vadd.f32 %v377, %v411
        %v416 = vadd.f32 %v378, %v412
        %v417 = vadd.f32 %v379, %v413
        %v418 = vadd.f32 %v380, %v414
        %419 = vrot.lane.b32.xlu0 %v242, 96
        %v420 = vpop.permute.xlu0 %419
        %421 = vrot.lane.b32.xlu0 %v239, 96
        %v422 = vpop.permute.xlu0 %421
        %423 = vrot.lane.b32.xlu0 %v243, 96
        %v424 = vpop.permute.xlu0 %423
        %425 = vrot.lane.b32.xlu0 %v240, 96
        %v426 = vpop.permute.xlu0 %425
        %427 = vrot.lane.b32.xlu0 %v244, 96
        %v428 = vpop.permute.xlu0 %427
        %429 = vrot.lane.b32.xlu0 %v241, 96
        %v430 = vpop.permute.xlu0 %429
        %vm431 = vcmp.lt.s32.totalorder %v258, 96
        %v432 = vsel %vm431, %v424, %v428
        %v433 = vsel %vm431, %v426, %v430
        %v434 = vsel %vm431, %v420, %v424
        %v435 = vsel %vm431, %v422, %v426
        %s436 = scalar_lea.vmem [#allocation6], 5
        %v437 = vld [vmem:[%s436] ss:$8 sm:$0x3]
        %v439 = vlaneseq
        %v440 = vshrl.u32 %v439, 7
        %v441 = vsub.s32 0, %v440
        %v442 = vrot.slane %v437, %v441
        %v443 = vlaneseq
        %v444 = vshrl.u32 %v443, 7
        %v445 = vsub.s32 1, %v444
        %v446 = vrot.slane %v437, %v445
        %v449 = vmul.f32 %v434, %v442
        %v450 = vmul.f32 %v432, %v446
        %v451 = vmul.f32 %v435, %v442
        %v452 = vmul.f32 %v433, %v446
        %v453 = vadd.f32 %v415, %v449
        %v454 = vadd.f32 %v416, %v450
        %v455 = vadd.f32 %v417, %v451
        %v456 = vadd.f32 %v418, %v452
        %457 = vrot.lane.b32.xlu0 %v242, 80
        %v458 = vpop.permute.xlu0 %457
        %459 = vrot.lane.b32.xlu0 %v239, 80
        %v460 = vpop.permute.xlu0 %459
        %461 = vrot.lane.b32.xlu0 %v243, 80
        %v462 = vpop.permute.xlu0 %461
        %463 = vrot.lane.b32.xlu0 %v240, 80
        %v464 = vpop.permute.xlu0 %463
        %465 = vrot.lane.b32.xlu0 %v244, 80
        %v466 = vpop.permute.xlu0 %465
        %467 = vrot.lane.b32.xlu0 %v241, 80
        %v468 = vpop.permute.xlu0 %467
        %vm469 = vcmp.lt.s32.totalorder %v258, 80
        %v470 = vsel %vm469, %v462, %v466
        %v471 = vsel %vm469, %v464, %v468
        %v472 = vsel %vm469, %v458, %v462
        %v473 = vsel %vm469, %v460, %v464
        %s474 = scalar_lea.vmem [#allocation6], 6
        %v475 = vld [vmem:[%s474] ss:$8 sm:$0x3]
        %v477 = vlaneseq
        %v478 = vshrl.u32 %v477, 7
        %v479 = vsub.s32 0, %v478
        %v480 = vrot.slane %v475, %v479
        %v481 = vlaneseq
        %v482 = vshrl.u32 %v481, 7
        %v483 = vsub.s32 1, %v482
        %v484 = vrot.slane %v475, %v483
        %v487 = vmul.f32 %v472, %v480
        %v488 = vmul.f32 %v470, %v484
        %v489 = vmul.f32 %v473, %v480
        %v490 = vmul.f32 %v471, %v484
        %v491 = vadd.f32 %v453, %v487
        %v492 = vadd.f32 %v454, %v488
        %v493 = vadd.f32 %v455, %v489
        %v494 = vadd.f32 %v456, %v490
        %v495 = vrot.slane %v218, 6
        %v496 = vrot.slane %v219, 6
        %v497 = vrot.slane %v220, 6
        %v498 = vrot.slane %v221, 6
        %v499 = vrot.slane %v222, 6
        %v500 = vrot.slane %v223, 6
        %v501 = vrot.slane %v224, 6
        %v502 = vrot.slane %v225, 6
        %v503 = vrot.slane %v226, 6
        %vm504 = vcmp.lt.s32.totalorder %v237, 2
        %v505 = vsel %vm504, %v495, %v498
        %v506 = vsel %vm504, %v496, %v499
        %v507 = vsel %vm504, %v497, %v500
        %v508 = vsel %vm504, %v501, %v495
        %v509 = vsel %vm504, %v502, %v496
        %v510 = vsel %vm504, %v503, %v497
        %511 = vrot.lane.b32.xlu0 %v508, 48
        %v512 = vpop.permute.xlu0 %511
        %513 = vrot.lane.b32.xlu0 %v505, 48
        %v514 = vpop.permute.xlu0 %513
        %515 = vrot.lane.b32.xlu0 %v509, 48
        %v516 = vpop.permute.xlu0 %515
        %517 = vrot.lane.b32.xlu0 %v506, 48
        %v518 = vpop.permute.xlu0 %517
        %519 = vrot.lane.b32.xlu0 %v510, 48
        %v520 = vpop.permute.xlu0 %519
        %521 = vrot.lane.b32.xlu0 %v507, 48
        %v522 = vpop.permute.xlu0 %521
        %v523 = vsel %vm259, %v512, %v516
        %v524 = vsel %vm259, %v514, %v518
        %v525 = vsel %vm259, %v520, %v512
        %v526 = vsel %vm259, %v522, %v514
        %s527 = scalar_lea.vmem [#allocation6], 7
        %v528 = vld [vmem:[%s527] ss:$8 sm:$0x3]
        %v530 = vlaneseq
        %v531 = vshrl.u32 %v530, 7
        %v532 = vsub.s32 0, %v531
        %v533 = vrot.slane %v528, %v532
        %v534 = vlaneseq
        %v535 = vshrl.u32 %v534, 7
        %v536 = vsub.s32 1, %v535
        %v537 = vrot.slane %v528, %v536
        %v540 = vmul.f32 %v525, %v533
        %v541 = vmul.f32 %v523, %v537
        %v542 = vmul.f32 %v526, %v533
        %v543 = vmul.f32 %v524, %v537
        %v544 = vadd.f32 %v491, %v540
        %v545 = vadd.f32 %v492, %v541
        %v546 = vadd.f32 %v493, %v542
        %v547 = vadd.f32 %v494, %v543
        %548 = vrot.lane.b32.xlu0 %v508, 32
        %v549 = vpop.permute.xlu0 %548
        %550 = vrot.lane.b32.xlu0 %v505, 32
        %v551 = vpop.permute.xlu0 %550
        %552 = vrot.lane.b32.xlu0 %v509, 32
        %v553 = vpop.permute.xlu0 %552
        %554 = vrot.lane.b32.xlu0 %v506, 32
        %v555 = vpop.permute.xlu0 %554
        %556 = vrot.lane.b32.xlu0 %v510, 32
        %v557 = vpop.permute.xlu0 %556
        %558 = vrot.lane.b32.xlu0 %v507, 32
        %v559 = vpop.permute.xlu0 %558
        %v560 = vsel %vm296, %v549, %v553
        %v561 = vsel %vm296, %v551, %v555
        %v562 = vsel %vm296, %v557, %v549
        %v563 = vsel %vm296, %v559, %v551
        %s564 = scalar_lea.vmem [#allocation6], 16
        %v565 = vld [vmem:[%s564] ss:$8 sm:$0x3]
        %v567 = vlaneseq
        %v568 = vshrl.u32 %v567, 7
        %v569 = vsub.s32 0, %v568
        %v570 = vrot.slane %v565, %v569
        %v571 = vlaneseq
        %v572 = vshrl.u32 %v571, 7
        %v573 = vsub.s32 1, %v572
        %v574 = vrot.slane %v565, %v573
        %v577 = vmul.f32 %v562, %v570
        %v578 = vmul.f32 %v560, %v574
        %v579 = vmul.f32 %v563, %v570
        %v580 = vmul.f32 %v561, %v574
        %v581 = vadd.f32 %v544, %v577
        %v582 = vadd.f32 %v545, %v578
        %v583 = vadd.f32 %v546, %v579
        %v584 = vadd.f32 %v547, %v580
        %585 = vrot.lane.b32.xlu0 %v508, 16
        %v586 = vpop.permute.xlu0 %585
        %587 = vrot.lane.b32.xlu0 %v505, 16
        %v588 = vpop.permute.xlu0 %587
        %589 = vrot.lane.b32.xlu0 %v509, 16
        %v590 = vpop.permute.xlu0 %589
        %591 = vrot.lane.b32.xlu0 %v506, 16
        %v592 = vpop.permute.xlu0 %591
        %593 = vrot.lane.b32.xlu0 %v510, 16
        %v594 = vpop.permute.xlu0 %593
        %595 = vrot.lane.b32.xlu0 %v507, 16
        %v596 = vpop.permute.xlu0 %595
        %v597 = vsel %vm334, %v586, %v590
        %v598 = vsel %vm334, %v588, %v592
        %v599 = vsel %vm334, %v594, %v586
        %v600 = vsel %vm334, %v596, %v588
        %s601 = scalar_lea.vmem [#allocation6], 17
        %v602 = vld [vmem:[%s601] ss:$8 sm:$0x3]
        %v604 = vlaneseq
        %v605 = vshrl.u32 %v604, 7
        %v606 = vsub.s32 0, %v605
        %v607 = vrot.slane %v602, %v606
        %v608 = vlaneseq
        %v609 = vshrl.u32 %v608, 7
        %v610 = vsub.s32 1, %v609
        %v611 = vrot.slane %v602, %v610
        %v614 = vmul.f32 %v599, %v607
        %v615 = vmul.f32 %v597, %v611
        %v616 = vmul.f32 %v600, %v607
        %v617 = vmul.f32 %v598, %v611
        %v618 = vadd.f32 %v581, %v614
        %v619 = vadd.f32 %v582, %v615
        %v620 = vadd.f32 %v583, %v616
        %v621 = vadd.f32 %v584, %v617
        %s622 = scalar_lea.vmem [#allocation6], 18
        %v623 = vld [vmem:[%s622] ss:$8 sm:$0x3]
        %v625 = vlaneseq
        %v626 = vshrl.u32 %v625, 7
        %v627 = vsub.s32 0, %v626
        %v628 = vrot.slane %v623, %v627
        %v629 = vlaneseq
        %v630 = vshrl.u32 %v629, 7
        %v631 = vsub.s32 1, %v630
        %v632 = vrot.slane %v623, %v631
        %v635 = vmul.f32 %v508, %v628
        %v636 = vmul.f32 %v509, %v632
        %v637 = vmul.f32 %v505, %v628
        %v638 = vmul.f32 %v506, %v632
        %v639 = vadd.f32 %v618, %v635
        %v640 = vadd.f32 %v619, %v636
        %v641 = vadd.f32 %v620, %v637
        %v642 = vadd.f32 %v621, %v638
        %643 = vrot.lane.b32.xlu0 %v508, 112
        %v644 = vpop.permute.xlu0 %643
        %645 = vrot.lane.b32.xlu0 %v505, 112
        %v646 = vpop.permute.xlu0 %645
        %647 = vrot.lane.b32.xlu0 %v509, 112
        %v648 = vpop.permute.xlu0 %647
        %649 = vrot.lane.b32.xlu0 %v506, 112
        %v650 = vpop.permute.xlu0 %649
        %651 = vrot.lane.b32.xlu0 %v510, 112
        %v652 = vpop.permute.xlu0 %651
        %653 = vrot.lane.b32.xlu0 %v507, 112
        %v654 = vpop.permute.xlu0 %653
        %v655 = vsel %vm393, %v648, %v652
        %v656 = vsel %vm393, %v650, %v654
        %v657 = vsel %vm393, %v644, %v648
        %v658 = vsel %vm393, %v646, %v650
        %s659 = scalar_lea.vmem [#allocation6], 19
        %v660 = vld [vmem:[%s659] ss:$8 sm:$0x3]
        %v662 = vlaneseq
        %v663 = vshrl.u32 %v662, 7
        %v664 = vsub.s32 0, %v663
        %v665 = vrot.slane %v660, %v664
        %v666 = vlaneseq
        %v667 = vshrl.u32 %v666, 7
        %v668 = vsub.s32 1, %v667
        %v669 = vrot.slane %v660, %v668
        %v672 = vmul.f32 %v657, %v665
        %v673 = vmul.f32 %v655, %v669
        %v674 = vmul.f32 %v658, %v665
        %v675 = vmul.f32 %v656, %v669
        %v676 = vadd.f32 %v639, %v672
        %v677 = vadd.f32 %v640, %v673
        %v678 = vadd.f32 %v641, %v674
        %v679 = vadd.f32 %v642, %v675
        %680 = vrot.lane.b32.xlu0 %v508, 96
        %v681 = vpop.permute.xlu0 %680
        %682 = vrot.lane.b32.xlu0 %v505, 96
        %v683 = vpop.permute.xlu0 %682
        %684 = vrot.lane.b32.xlu0 %v509, 96
        %v685 = vpop.permute.xlu0 %684
        %686 = vrot.lane.b32.xlu0 %v506, 96
        %v687 = vpop.permute.xlu0 %686
        %688 = vrot.lane.b32.xlu0 %v510, 96
        %v689 = vpop.permute.xlu0 %688
        %690 = vrot.lane.b32.xlu0 %v507, 96
        %v691 = vpop.permute.xlu0 %690
        %v692 = vsel %vm431, %v685, %v689
        %v693 = vsel %vm431, %v687, %v691
        %v694 = vsel %vm431, %v681, %v685
        %v695 = vsel %vm431, %v683, %v687
        %s696 = scalar_lea.vmem [#allocation6], 20
        %v697 = vld [vmem:[%s696] ss:$8 sm:$0x3]
        %v699 = vlaneseq
        %v700 = vshrl.u32 %v699, 7
        %v701 = vsub.s32 0, %v700
        %v702 = vrot.slane %v697, %v701
        %v703 = vlaneseq
        %v704 = vshrl.u32 %v703, 7
        %v705 = vsub.s32 1, %v704
        %v706 = vrot.slane %v697, %v705
        %v709 = vmul.f32 %v694, %v702
        %v710 = vmul.f32 %v692, %v706
        %v711 = vmul.f32 %v695, %v702
        %v712 = vmul.f32 %v693, %v706
        %v713 = vadd.f32 %v676, %v709
        %v714 = vadd.f32 %v677, %v710
        %v715 = vadd.f32 %v678, %v711
        %v716 = vadd.f32 %v679, %v712
        %717 = vrot.lane.b32.xlu0 %v508, 80
        %v718 = vpop.permute.xlu0 %717
        %719 = vrot.lane.b32.xlu0 %v505, 80
        %v720 = vpop.permute.xlu0 %719
        %721 = vrot.lane.b32.xlu0 %v509, 80
        %v722 = vpop.permute.xlu0 %721
        %723 = vrot.lane.b32.xlu0 %v506, 80
        %v724 = vpop.permute.xlu0 %723
        %725 = vrot.lane.b32.xlu0 %v510, 80
        %v726 = vpop.permute.xlu0 %725
        %727 = vrot.lane.b32.xlu0 %v507, 80
        %v728 = vpop.permute.xlu0 %727
        %v729 = vsel %vm469, %v722, %v726
        %v730 = vsel %vm469, %v724, %v728
        %v731 = vsel %vm469, %v718, %v722
        %v732 = vsel %vm469, %v720, %v724
        %s733 = scalar_lea.vmem [#allocation6], 21
        %v734 = vld [vmem:[%s733] ss:$8 sm:$0x3]
        %v736 = vlaneseq
        %v737 = vshrl.u32 %v736, 7
        %v738 = vsub.s32 0, %v737
        %v739 = vrot.slane %v734, %v738
        %v740 = vlaneseq
        %v741 = vshrl.u32 %v740, 7
        %v742 = vsub.s32 1, %v741
        %v743 = vrot.slane %v734, %v742
        %v746 = vmul.f32 %v731, %v739
        %v747 = vmul.f32 %v729, %v743
        %v748 = vmul.f32 %v732, %v739
        %v749 = vmul.f32 %v730, %v743
        %v750 = vadd.f32 %v713, %v746
        %v751 = vadd.f32 %v714, %v747
        %v752 = vadd.f32 %v715, %v748
        %v753 = vadd.f32 %v716, %v749
        %v754 = vrot.slane %v218, 7
        %v755 = vrot.slane %v219, 7
        %v756 = vrot.slane %v220, 7
        %v757 = vrot.slane %v221, 7
        %v758 = vrot.slane %v222, 7
        %v759 = vrot.slane %v223, 7
        %v760 = vrot.slane %v224, 7
        %v761 = vrot.slane %v225, 7
        %v762 = vrot.slane %v226, 7
        %vm763 = vcmp.lt.s32.totalorder %v237, 1
        %v764 = vsel %vm763, %v754, %v757
        %v765 = vsel %vm763, %v755, %v758
        %v766 = vsel %vm763, %v756, %v759
        %v767 = vsel %vm763, %v760, %v754
        %v768 = vsel %vm763, %v761, %v755
        %v769 = vsel %vm763, %v762, %v756
        %770 = vrot.lane.b32.xlu0 %v767, 48
        %v771 = vpop.permute.xlu0 %770
        %772 = vrot.lane.b32.xlu0 %v764, 48
        %v773 = vpop.permute.xlu0 %772
        %774 = vrot.lane.b32.xlu0 %v768, 48
        %v775 = vpop.permute.xlu0 %774
        %776 = vrot.lane.b32.xlu0 %v765, 48
        %v777 = vpop.permute.xlu0 %776
        %778 = vrot.lane.b32.xlu0 %v769, 48
        %v779 = vpop.permute.xlu0 %778
        %780 = vrot.lane.b32.xlu0 %v766, 48
        %v781 = vpop.permute.xlu0 %780
        %v782 = vsel %vm259, %v771, %v775
        %v783 = vsel %vm259, %v773, %v777
        %v784 = vsel %vm259, %v779, %v771
        %v785 = vsel %vm259, %v781, %v773
        %s786 = scalar_lea.vmem [#allocation6], 22
        %v787 = vld [vmem:[%s786] ss:$8 sm:$0x3]
        %v789 = vlaneseq
        %v790 = vshrl.u32 %v789, 7
        %v791 = vsub.s32 0, %v790
        %v792 = vrot.slane %v787, %v791
        %v793 = vlaneseq
        %v794 = vshrl.u32 %v793, 7
        %v795 = vsub.s32 1, %v794
        %v796 = vrot.slane %v787, %v795
        %v799 = vmul.f32 %v784, %v792
        %v800 = vmul.f32 %v782, %v796
        %v801 = vmul.f32 %v785, %v792
        %v802 = vmul.f32 %v783, %v796
        %v803 = vadd.f32 %v750, %v799
        %v804 = vadd.f32 %v751, %v800
        %v805 = vadd.f32 %v752, %v801
        %v806 = vadd.f32 %v753, %v802
        %807 = vrot.lane.b32.xlu0 %v767, 32
        %v808 = vpop.permute.xlu0 %807
        %809 = vrot.lane.b32.xlu0 %v764, 32
        %v810 = vpop.permute.xlu0 %809
        %811 = vrot.lane.b32.xlu0 %v768, 32
        %v812 = vpop.permute.xlu0 %811
        %813 = vrot.lane.b32.xlu0 %v765, 32
        %v814 = vpop.permute.xlu0 %813
        %815 = vrot.lane.b32.xlu0 %v769, 32
        %v816 = vpop.permute.xlu0 %815
        %817 = vrot.lane.b32.xlu0 %v766, 32
        %v818 = vpop.permute.xlu0 %817
        %v819 = vsel %vm296, %v808, %v812
        %v820 = vsel %vm296, %v810, %v814
        %v821 = vsel %vm296, %v816, %v808
        %v822 = vsel %vm296, %v818, %v810
        %s823 = scalar_lea.vmem [#allocation6], 23
        %v824 = vld [vmem:[%s823] ss:$8 sm:$0x3]
        %v826 = vlaneseq
        %v827 = vshrl.u32 %v826, 7
        %v828 = vsub.s32 0, %v827
        %v829 = vrot.slane %v824, %v828
        %v830 = vlaneseq
        %v831 = vshrl.u32 %v830, 7
        %v832 = vsub.s32 1, %v831
        %v833 = vrot.slane %v824, %v832
        %v836 = vmul.f32 %v821, %v829
        %v837 = vmul.f32 %v819, %v833
        %v838 = vmul.f32 %v822, %v829
        %v839 = vmul.f32 %v820, %v833
        %v840 = vadd.f32 %v803, %v836
        %v841 = vadd.f32 %v804, %v837
        %v842 = vadd.f32 %v805, %v838
        %v843 = vadd.f32 %v806, %v839
        %844 = vrot.lane.b32.xlu0 %v767, 16
        %v845 = vpop.permute.xlu0 %844
        %846 = vrot.lane.b32.xlu0 %v764, 16
        %v847 = vpop.permute.xlu0 %846
        %848 = vrot.lane.b32.xlu0 %v768, 16
        %v849 = vpop.permute.xlu0 %848
        %850 = vrot.lane.b32.xlu0 %v765, 16
        %v851 = vpop.permute.xlu0 %850
        %852 = vrot.lane.b32.xlu0 %v769, 16
        %v853 = vpop.permute.xlu0 %852
        %854 = vrot.lane.b32.xlu0 %v766, 16
        %v855 = vpop.permute.xlu0 %854
        %v856 = vsel %vm334, %v845, %v849
        %v857 = vsel %vm334, %v847, %v851
        %v858 = vsel %vm334, %v853, %v845
        %v859 = vsel %vm334, %v855, %v847
        %s860 = scalar_lea.vmem [#allocation6], 32
        %v861 = vld [vmem:[%s860] ss:$8 sm:$0x3]
        %v863 = vlaneseq
        %v864 = vshrl.u32 %v863, 7
        %v865 = vsub.s32 0, %v864
        %v866 = vrot.slane %v861, %v865
        %v867 = vlaneseq
        %v868 = vshrl.u32 %v867, 7
        %v869 = vsub.s32 1, %v868
        %v870 = vrot.slane %v861, %v869
        %v873 = vmul.f32 %v858, %v866
        %v874 = vmul.f32 %v856, %v870
        %v875 = vmul.f32 %v859, %v866
        %v876 = vmul.f32 %v857, %v870
        %v877 = vadd.f32 %v840, %v873
        %v878 = vadd.f32 %v841, %v874
        %v879 = vadd.f32 %v842, %v875
        %v880 = vadd.f32 %v843, %v876
        %s881 = scalar_lea.vmem [#allocation6], 33
        %v882 = vld [vmem:[%s881] ss:$8 sm:$0x3]
        %v884 = vlaneseq
        %v885 = vshrl.u32 %v884, 7
        %v886 = vsub.s32 0, %v885
        %v887 = vrot.slane %v882, %v886
        %v888 = vlaneseq
        %v889 = vshrl.u32 %v888, 7
        %v890 = vsub.s32 1, %v889
        %v891 = vrot.slane %v882, %v890
        %v894 = vmul.f32 %v767, %v887
        %v895 = vmul.f32 %v768, %v891
        %v896 = vmul.f32 %v764, %v887
        %v897 = vmul.f32 %v765, %v891
        %v898 = vadd.f32 %v877, %v894
        %v899 = vadd.f32 %v878, %v895
        %v900 = vadd.f32 %v879, %v896
        %v901 = vadd.f32 %v880, %v897
        %902 = vrot.lane.b32.xlu0 %v767, 112
        %v903 = vpop.permute.xlu0 %902
        %904 = vrot.lane.b32.xlu0 %v764, 112
        %v905 = vpop.permute.xlu0 %904
        %906 = vrot.lane.b32.xlu0 %v768, 112
        %v907 = vpop.permute.xlu0 %906
        %908 = vrot.lane.b32.xlu0 %v765, 112
        %v909 = vpop.permute.xlu0 %908
        %910 = vrot.lane.b32.xlu0 %v769, 112
        %v911 = vpop.permute.xlu0 %910
        %912 = vrot.lane.b32.xlu0 %v766, 112
        %v913 = vpop.permute.xlu0 %912
        %v914 = vsel %vm393, %v907, %v911
        %v915 = vsel %vm393, %v909, %v913
        %v916 = vsel %vm393, %v903, %v907
        %v917 = vsel %vm393, %v905, %v909
        %s918 = scalar_lea.vmem [#allocation6], 34
        %v919 = vld [vmem:[%s918] ss:$8 sm:$0x3]
        %v921 = vlaneseq
        %v922 = vshrl.u32 %v921, 7
        %v923 = vsub.s32 0, %v922
        %v924 = vrot.slane %v919, %v923
        %v925 = vlaneseq
        %v926 = vshrl.u32 %v925, 7
        %v927 = vsub.s32 1, %v926
        %v928 = vrot.slane %v919, %v927
        %v931 = vmul.f32 %v916, %v924
        %v932 = vmul.f32 %v914, %v928
        %v933 = vmul.f32 %v917, %v924
        %v934 = vmul.f32 %v915, %v928
        %v935 = vadd.f32 %v898, %v931
        %v936 = vadd.f32 %v899, %v932
        %v937 = vadd.f32 %v900, %v933
        %v938 = vadd.f32 %v901, %v934
        %939 = vrot.lane.b32.xlu0 %v767, 96
        %v940 = vpop.permute.xlu0 %939
        %941 = vrot.lane.b32.xlu0 %v764, 96
        %v942 = vpop.permute.xlu0 %941
        %943 = vrot.lane.b32.xlu0 %v768, 96
        %v944 = vpop.permute.xlu0 %943
        %945 = vrot.lane.b32.xlu0 %v765, 96
        %v946 = vpop.permute.xlu0 %945
        %947 = vrot.lane.b32.xlu0 %v769, 96
        %v948 = vpop.permute.xlu0 %947
        %949 = vrot.lane.b32.xlu0 %v766, 96
        %v950 = vpop.permute.xlu0 %949
        %v951 = vsel %vm431, %v944, %v948
        %v952 = vsel %vm431, %v946, %v950
        %v953 = vsel %vm431, %v940, %v944
        %v954 = vsel %vm431, %v942, %v946
        %s955 = scalar_lea.vmem [#allocation6], 35
        %v956 = vld [vmem:[%s955] ss:$8 sm:$0x3]
        %v958 = vlaneseq
        %v959 = vshrl.u32 %v958, 7
        %v960 = vsub.s32 0, %v959
        %v961 = vrot.slane %v956, %v960
        %v962 = vlaneseq
        %v963 = vshrl.u32 %v962, 7
        %v964 = vsub.s32 1, %v963
        %v965 = vrot.slane %v956, %v964
        %v968 = vmul.f32 %v953, %v961
        %v969 = vmul.f32 %v951, %v965
        %v970 = vmul.f32 %v954, %v961
        %v971 = vmul.f32 %v952, %v965
        %v972 = vadd.f32 %v935, %v968
        %v973 = vadd.f32 %v936, %v969
        %v974 = vadd.f32 %v937, %v970
        %v975 = vadd.f32 %v938, %v971
        %976 = vrot.lane.b32.xlu0 %v767, 80
        %v977 = vpop.permute.xlu0 %976
        %978 = vrot.lane.b32.xlu0 %v764, 80
        %v979 = vpop.permute.xlu0 %978
        %980 = vrot.lane.b32.xlu0 %v768, 80
        %v981 = vpop.permute.xlu0 %980
        %982 = vrot.lane.b32.xlu0 %v765, 80
        %v983 = vpop.permute.xlu0 %982
        %984 = vrot.lane.b32.xlu0 %v769, 80
        %v985 = vpop.permute.xlu0 %984
        %986 = vrot.lane.b32.xlu0 %v766, 80
        %v987 = vpop.permute.xlu0 %986
        %v988 = vsel %vm469, %v981, %v985
        %v989 = vsel %vm469, %v983, %v987
        %v990 = vsel %vm469, %v977, %v981
        %v991 = vsel %vm469, %v979, %v983
        %s992 = scalar_lea.vmem [#allocation6], 36
        %v993 = vld [vmem:[%s992] ss:$8 sm:$0x3]
        %v995 = vlaneseq
        %v996 = vshrl.u32 %v995, 7
        %v997 = vsub.s32 0, %v996
        %v998 = vrot.slane %v993, %v997
        %v999 = vlaneseq
        %v1000 = vshrl.u32 %v999, 7
        %v1001 = vsub.s32 1, %v1000
        %v1002 = vrot.slane %v993, %v1001
        %v1005 = vmul.f32 %v990, %v998
        %v1006 = vmul.f32 %v988, %v1002
        %v1007 = vmul.f32 %v991, %v998
        %v1008 = vmul.f32 %v989, %v1002
        %v1009 = vadd.f32 %v972, %v1005
        %v1010 = vadd.f32 %v973, %v1006
        %v1011 = vadd.f32 %v974, %v1007
        %v1012 = vadd.f32 %v975, %v1008
        %1013 = vrot.lane.b32.xlu0 %v218, 48
        %v1014 = vpop.permute.xlu0 %1013
        %1015 = vrot.lane.b32.xlu0 %v221, 48
        %v1016 = vpop.permute.xlu0 %1015
        %1017 = vrot.lane.b32.xlu0 %v219, 48
        %v1018 = vpop.permute.xlu0 %1017
        %1019 = vrot.lane.b32.xlu0 %v222, 48
        %v1020 = vpop.permute.xlu0 %1019
        %1021 = vrot.lane.b32.xlu0 %v220, 48
        %v1022 = vpop.permute.xlu0 %1021
        %1023 = vrot.lane.b32.xlu0 %v223, 48
        %v1024 = vpop.permute.xlu0 %1023
        %v1025 = vsel %vm259, %v1014, %v1018
        %v1026 = vsel %vm259, %v1016, %v1020
        %v1027 = vsel %vm259, %v1022, %v1014
        %v1028 = vsel %vm259, %v1024, %v1016
        %s1029 = scalar_lea.vmem [#allocation6], 37
        %v1030 = vld [vmem:[%s1029] ss:$8 sm:$0x3]
        %v1032 = vlaneseq
        %v1033 = vshrl.u32 %v1032, 7
        %v1034 = vsub.s32 0, %v1033
        %v1035 = vrot.slane %v1030, %v1034
        %v1036 = vlaneseq
        %v1037 = vshrl.u32 %v1036, 7
        %v1038 = vsub.s32 1, %v1037
        %v1039 = vrot.slane %v1030, %v1038
        %v1042 = vmul.f32 %v1027, %v1035
        %v1043 = vmul.f32 %v1025, %v1039
        %v1044 = vmul.f32 %v1028, %v1035
        %v1045 = vmul.f32 %v1026, %v1039
        %v1046 = vadd.f32 %v1009, %v1042
        %v1047 = vadd.f32 %v1010, %v1043
        %v1048 = vadd.f32 %v1011, %v1044
        %v1049 = vadd.f32 %v1012, %v1045
        %1050 = vrot.lane.b32.xlu0 %v218, 32
        %v1051 = vpop.permute.xlu0 %1050
        %1052 = vrot.lane.b32.xlu0 %v221, 32
        %v1053 = vpop.permute.xlu0 %1052
        %1054 = vrot.lane.b32.xlu0 %v219, 32
        %v1055 = vpop.permute.xlu0 %1054
        %1056 = vrot.lane.b32.xlu0 %v222, 32
        %v1057 = vpop.permute.xlu0 %1056
        %1058 = vrot.lane.b32.xlu0 %v220, 32
        %v1059 = vpop.permute.xlu0 %1058
        %1060 = vrot.lane.b32.xlu0 %v223, 32
        %v1061 = vpop.permute.xlu0 %1060
        %v1062 = vsel %vm296, %v1051, %v1055
        %v1063 = vsel %vm296, %v1053, %v1057
        %v1064 = vsel %vm296, %v1059, %v1051
        %v1065 = vsel %vm296, %v1061, %v1053
        %s1066 = scalar_lea.vmem [#allocation6], 38
        %v1067 = vld [vmem:[%s1066] ss:$8 sm:$0x3]
        %v1069 = vlaneseq
        %v1070 = vshrl.u32 %v1069, 7
        %v1071 = vsub.s32 0, %v1070
        %v1072 = vrot.slane %v1067, %v1071
        %v1073 = vlaneseq
        %v1074 = vshrl.u32 %v1073, 7
        %v1075 = vsub.s32 1, %v1074
        %v1076 = vrot.slane %v1067, %v1075
        %v1079 = vmul.f32 %v1064, %v1072
        %v1080 = vmul.f32 %v1062, %v1076
        %v1081 = vmul.f32 %v1065, %v1072
        %v1082 = vmul.f32 %v1063, %v1076
        %v1083 = vadd.f32 %v1046, %v1079
        %v1084 = vadd.f32 %v1047, %v1080
        %v1085 = vadd.f32 %v1048, %v1081
        %v1086 = vadd.f32 %v1049, %v1082
        %1087 = vrot.lane.b32.xlu0 %v218, 16
        %v1088 = vpop.permute.xlu0 %1087
        %1089 = vrot.lane.b32.xlu0 %v221, 16
        %v1090 = vpop.permute.xlu0 %1089
        %1091 = vrot.lane.b32.xlu0 %v219, 16
        %v1092 = vpop.permute.xlu0 %1091
        %1093 = vrot.lane.b32.xlu0 %v222, 16
        %v1094 = vpop.permute.xlu0 %1093
        %1095 = vrot.lane.b32.xlu0 %v220, 16
        %v1096 = vpop.permute.xlu0 %1095
        %1097 = vrot.lane.b32.xlu0 %v223, 16
        %v1098 = vpop.permute.xlu0 %1097
        %v1099 = vsel %vm334, %v1088, %v1092
        %v1100 = vsel %vm334, %v1090, %v1094
        %v1101 = vsel %vm334, %v1096, %v1088
        %v1102 = vsel %vm334, %v1098, %v1090
        %s1103 = scalar_lea.vmem [#allocation6], 39
        %v1104 = vld [vmem:[%s1103] ss:$8 sm:$0x3]
        %v1106 = vlaneseq
        %v1107 = vshrl.u32 %v1106, 7
        %v1108 = vsub.s32 0, %v1107
        %v1109 = vrot.slane %v1104, %v1108
        %v1110 = vlaneseq
        %v1111 = vshrl.u32 %v1110, 7
        %v1112 = vsub.s32 1, %v1111
        %v1113 = vrot.slane %v1104, %v1112
        %v1116 = vmul.f32 %v1101, %v1109
        %v1117 = vmul.f32 %v1099, %v1113
        %v1118 = vmul.f32 %v1102, %v1109
        %v1119 = vmul.f32 %v1100, %v1113
        %v1120 = vadd.f32 %v1083, %v1116
        %v1121 = vadd.f32 %v1084, %v1117
        %v1122 = vadd.f32 %v1085, %v1118
        %v1123 = vadd.f32 %v1086, %v1119
        %s1124 = scalar_lea.vmem [#allocation6], 48
        %v1125 = vld [vmem:[%s1124] ss:$8 sm:$0x3]
        %v1127 = vlaneseq
        %v1128 = vshrl.u32 %v1127, 7
        %v1129 = vsub.s32 0, %v1128
        %v1130 = vrot.slane %v1125, %v1129
        %v1131 = vlaneseq
        %v1132 = vshrl.u32 %v1131, 7
        %v1133 = vsub.s32 1, %v1132
        %v1134 = vrot.slane %v1125, %v1133
        %v1137 = vmul.f32 %v218, %v1130
        %v1138 = vmul.f32 %v219, %v1134
        %v1139 = vmul.f32 %v221, %v1130
        %v1140 = vmul.f32 %v222, %v1134
        %v1141 = vadd.f32 %v1120, %v1137
        %v1142 = vadd.f32 %v1121, %v1138
        %v1143 = vadd.f32 %v1122, %v1139
        %v1144 = vadd.f32 %v1123, %v1140
        %1145 = vrot.lane.b32.xlu0 %v218, 112
        %v1146 = vpop.permute.xlu0 %1145
        %1147 = vrot.lane.b32.xlu0 %v221, 112
        %v1148 = vpop.permute.xlu0 %1147
        %1149 = vrot.lane.b32.xlu0 %v219, 112
        %v1150 = vpop.permute.xlu0 %1149
        %1151 = vrot.lane.b32.xlu0 %v222, 112
        %v1152 = vpop.permute.xlu0 %1151
        %1153 = vrot.lane.b32.xlu0 %v220, 112
        %v1154 = vpop.permute.xlu0 %1153
        %1155 = vrot.lane.b32.xlu0 %v223, 112
        %v1156 = vpop.permute.xlu0 %1155
        %v1157 = vsel %vm393, %v1150, %v1154
        %v1158 = vsel %vm393, %v1152, %v1156
        %v1159 = vsel %vm393, %v1146, %v1150
        %v1160 = vsel %vm393, %v1148, %v1152
        %s1161 = scalar_lea.vmem [#allocation6], 49
        %v1162 = vld [vmem:[%s1161] ss:$8 sm:$0x3]
        %v1164 = vlaneseq
        %v1165 = vshrl.u32 %v1164, 7
        %v1166 = vsub.s32 0, %v1165
        %v1167 = vrot.slane %v1162, %v1166
        %v1168 = vlaneseq
        %v1169 = vshrl.u32 %v1168, 7
        %v1170 = vsub.s32 1, %v1169
        %v1171 = vrot.slane %v1162, %v1170
        %v1174 = vmul.f32 %v1159, %v1167
        %v1175 = vmul.f32 %v1157, %v1171
        %v1176 = vmul.f32 %v1160, %v1167
        %v1177 = vmul.f32 %v1158, %v1171
        %v1178 = vadd.f32 %v1141, %v1174
        %v1179 = vadd.f32 %v1142, %v1175
        %v1180 = vadd.f32 %v1143, %v1176
        %v1181 = vadd.f32 %v1144, %v1177
        %1182 = vrot.lane.b32.xlu0 %v218, 96
        %v1183 = vpop.permute.xlu0 %1182
        %1184 = vrot.lane.b32.xlu0 %v221, 96
        %v1185 = vpop.permute.xlu0 %1184
        %1186 = vrot.lane.b32.xlu0 %v219, 96
        %v1187 = vpop.permute.xlu0 %1186
        %1188 = vrot.lane.b32.xlu0 %v222, 96
        %v1189 = vpop.permute.xlu0 %1188
        %1190 = vrot.lane.b32.xlu0 %v220, 96
        %v1191 = vpop.permute.xlu0 %1190
        %1192 = vrot.lane.b32.xlu0 %v223, 96
        %v1193 = vpop.permute.xlu0 %1192
        %v1194 = vsel %vm431, %v1187, %v1191
        %v1195 = vsel %vm431, %v1189, %v1193
        %v1196 = vsel %vm431, %v1183, %v1187
        %v1197 = vsel %vm431, %v1185, %v1189
        %s1198 = scalar_lea.vmem [#allocation6], 50
        %v1199 = vld [vmem:[%s1198] ss:$8 sm:$0x3]
        %v1201 = vlaneseq
        %v1202 = vshrl.u32 %v1201, 7
        %v1203 = vsub.s32 0, %v1202
        %v1204 = vrot.slane %v1199, %v1203
        %v1205 = vlaneseq
        %v1206 = vshrl.u32 %v1205, 7
        %v1207 = vsub.s32 1, %v1206
        %v1208 = vrot.slane %v1199, %v1207
        %v1211 = vmul.f32 %v1196, %v1204
        %v1212 = vmul.f32 %v1194, %v1208
        %v1213 = vmul.f32 %v1197, %v1204
        %v1214 = vmul.f32 %v1195, %v1208
        %v1215 = vadd.f32 %v1178, %v1211
        %v1216 = vadd.f32 %v1179, %v1212
        %v1217 = vadd.f32 %v1180, %v1213
        %v1218 = vadd.f32 %v1181, %v1214
        %1219 = vrot.lane.b32.xlu0 %v218, 80
        %v1220 = vpop.permute.xlu0 %1219
        %1221 = vrot.lane.b32.xlu0 %v221, 80
        %v1222 = vpop.permute.xlu0 %1221
        %1223 = vrot.lane.b32.xlu0 %v219, 80
        %v1224 = vpop.permute.xlu0 %1223
        %1225 = vrot.lane.b32.xlu0 %v222, 80
        %v1226 = vpop.permute.xlu0 %1225
        %1227 = vrot.lane.b32.xlu0 %v220, 80
        %v1228 = vpop.permute.xlu0 %1227
        %1229 = vrot.lane.b32.xlu0 %v223, 80
        %v1230 = vpop.permute.xlu0 %1229
        %v1231 = vsel %vm469, %v1224, %v1228
        %v1232 = vsel %vm469, %v1226, %v1230
        %v1233 = vsel %vm469, %v1220, %v1224
        %v1234 = vsel %vm469, %v1222, %v1226
        %s1235 = scalar_lea.vmem [#allocation6], 51
        %v1236 = vld [vmem:[%s1235] ss:$8 sm:$0x3]
        %v1238 = vlaneseq
        %v1239 = vshrl.u32 %v1238, 7
        %v1240 = vsub.s32 0, %v1239
        %v1241 = vrot.slane %v1236, %v1240
        %v1242 = vlaneseq
        %v1243 = vshrl.u32 %v1242, 7
        %v1244 = vsub.s32 1, %v1243
        %v1245 = vrot.slane %v1236, %v1244
        %v1248 = vmul.f32 %v1233, %v1241
        %v1249 = vmul.f32 %v1231, %v1245
        %v1250 = vmul.f32 %v1234, %v1241
        %v1251 = vmul.f32 %v1232, %v1245
        %v1252 = vadd.f32 %v1215, %v1248
        %v1253 = vadd.f32 %v1216, %v1249
        %v1254 = vadd.f32 %v1217, %v1250
        %v1255 = vadd.f32 %v1218, %v1251
        %v1256 = vrot.slane %v218, 1
        %v1257 = vrot.slane %v219, 1
        %v1258 = vrot.slane %v220, 1
        %v1259 = vrot.slane %v221, 1
        %v1260 = vrot.slane %v222, 1
        %v1261 = vrot.slane %v223, 1
        %v1262 = vrot.slane %v224, 1
        %v1263 = vrot.slane %v225, 1
        %v1264 = vrot.slane %v226, 1
        %vm1265 = vcmp.lt.s32.totalorder %v237, 7
        %v1266 = vsel %vm1265, %v1259, %v1262
        %v1267 = vsel %vm1265, %v1260, %v1263
        %v1268 = vsel %vm1265, %v1261, %v1264
        %v1269 = vsel %vm1265, %v1256, %v1259
        %v1270 = vsel %vm1265, %v1257, %v1260
        %v1271 = vsel %vm1265, %v1258, %v1261
        %1272 = vrot.lane.b32.xlu0 %v1269, 48
        %v1273 = vpop.permute.xlu0 %1272
        %1274 = vrot.lane.b32.xlu0 %v1266, 48
        %v1275 = vpop.permute.xlu0 %1274
        %1276 = vrot.lane.b32.xlu0 %v1270, 48
        %v1277 = vpop.permute.xlu0 %1276
        %1278 = vrot.lane.b32.xlu0 %v1267, 48
        %v1279 = vpop.permute.xlu0 %1278
        %1280 = vrot.lane.b32.xlu0 %v1271, 48
        %v1281 = vpop.permute.xlu0 %1280
        %1282 = vrot.lane.b32.xlu0 %v1268, 48
        %v1283 = vpop.permute.xlu0 %1282
        %v1284 = vsel %vm259, %v1273, %v1277
        %v1285 = vsel %vm259, %v1275, %v1279
        %v1286 = vsel %vm259, %v1281, %v1273
        %v1287 = vsel %vm259, %v1283, %v1275
        %s1288 = scalar_lea.vmem [#allocation6], 52
        %v1289 = vld [vmem:[%s1288] ss:$8 sm:$0x3]
        %v1291 = vlaneseq
        %v1292 = vshrl.u32 %v1291, 7
        %v1293 = vsub.s32 0, %v1292
        %v1294 = vrot.slane %v1289, %v1293
        %v1295 = vlaneseq
        %v1296 = vshrl.u32 %v1295, 7
        %v1297 = vsub.s32 1, %v1296
        %v1298 = vrot.slane %v1289, %v1297
        %v1301 = vmul.f32 %v1286, %v1294
        %v1302 = vmul.f32 %v1284, %v1298
        %v1303 = vmul.f32 %v1287, %v1294
        %v1304 = vmul.f32 %v1285, %v1298
        %v1305 = vadd.f32 %v1252, %v1301
        %v1306 = vadd.f32 %v1253, %v1302
        %v1307 = vadd.f32 %v1254, %v1303
        %v1308 = vadd.f32 %v1255, %v1304
        %1309 = vrot.lane.b32.xlu0 %v1269, 32
        %v1310 = vpop.permute.xlu0 %1309
        %1311 = vrot.lane.b32.xlu0 %v1266, 32
        %v1312 = vpop.permute.xlu0 %1311
        %1313 = vrot.lane.b32.xlu0 %v1270, 32
        %v1314 = vpop.permute.xlu0 %1313
        %1315 = vrot.lane.b32.xlu0 %v1267, 32
        %v1316 = vpop.permute.xlu0 %1315
        %1317 = vrot.lane.b32.xlu0 %v1271, 32
        %v1318 = vpop.permute.xlu0 %1317
        %1319 = vrot.lane.b32.xlu0 %v1268, 32
        %v1320 = vpop.permute.xlu0 %1319
        %v1321 = vsel %vm296, %v1310, %v1314
        %v1322 = vsel %vm296, %v1312, %v1316
        %v1323 = vsel %vm296, %v1318, %v1310
        %v1324 = vsel %vm296, %v1320, %v1312
        %s1325 = scalar_lea.vmem [#allocation6], 53
        %v1326 = vld [vmem:[%s1325] ss:$8 sm:$0x3]
        %v1328 = vlaneseq
        %v1329 = vshrl.u32 %v1328, 7
        %v1330 = vsub.s32 0, %v1329
        %v1331 = vrot.slane %v1326, %v1330
        %v1332 = vlaneseq
        %v1333 = vshrl.u32 %v1332, 7
        %v1334 = vsub.s32 1, %v1333
        %v1335 = vrot.slane %v1326, %v1334
        %v1338 = vmul.f32 %v1323, %v1331
        %v1339 = vmul.f32 %v1321, %v1335
        %v1340 = vmul.f32 %v1324, %v1331
        %v1341 = vmul.f32 %v1322, %v1335
        %v1342 = vadd.f32 %v1305, %v1338
        %v1343 = vadd.f32 %v1306, %v1339
        %v1344 = vadd.f32 %v1307, %v1340
        %v1345 = vadd.f32 %v1308, %v1341
        %1346 = vrot.lane.b32.xlu0 %v1269, 16
        %v1347 = vpop.permute.xlu0 %1346
        %1348 = vrot.lane.b32.xlu0 %v1266, 16
        %v1349 = vpop.permute.xlu0 %1348
        %1350 = vrot.lane.b32.xlu0 %v1270, 16
        %v1351 = vpop.permute.xlu0 %1350
        %1352 = vrot.lane.b32.xlu0 %v1267, 16
        %v1353 = vpop.permute.xlu0 %1352
        %1354 = vrot.lane.b32.xlu0 %v1271, 16
        %v1355 = vpop.permute.xlu0 %1354
        %1356 = vrot.lane.b32.xlu0 %v1268, 16
        %v1357 = vpop.permute.xlu0 %1356
        %v1358 = vsel %vm334, %v1347, %v1351
        %v1359 = vsel %vm334, %v1349, %v1353
        %v1360 = vsel %vm334, %v1355, %v1347
        %v1361 = vsel %vm334, %v1357, %v1349
        %s1362 = scalar_lea.vmem [#allocation6], 54
        %v1363 = vld [vmem:[%s1362] ss:$8 sm:$0x3]
        %v1365 = vlaneseq
        %v1366 = vshrl.u32 %v1365, 7
        %v1367 = vsub.s32 0, %v1366
        %v1368 = vrot.slane %v1363, %v1367
        %v1369 = vlaneseq
        %v1370 = vshrl.u32 %v1369, 7
        %v1371 = vsub.s32 1, %v1370
        %v1372 = vrot.slane %v1363, %v1371
        %v1375 = vmul.f32 %v1360, %v1368
        %v1376 = vmul.f32 %v1358, %v1372
        %v1377 = vmul.f32 %v1361, %v1368
        %v1378 = vmul.f32 %v1359, %v1372
        %v1379 = vadd.f32 %v1342, %v1375
        %v1380 = vadd.f32 %v1343, %v1376
        %v1381 = vadd.f32 %v1344, %v1377
        %v1382 = vadd.f32 %v1345, %v1378
        %s1383 = scalar_lea.vmem [#allocation6], 55
        %v1384 = vld [vmem:[%s1383] ss:$8 sm:$0x3]
        %v1386 = vlaneseq
        %v1387 = vshrl.u32 %v1386, 7
        %v1388 = vsub.s32 0, %v1387
        %v1389 = vrot.slane %v1384, %v1388
        %v1390 = vlaneseq
        %v1391 = vshrl.u32 %v1390, 7
        %v1392 = vsub.s32 1, %v1391
        %v1393 = vrot.slane %v1384, %v1392
        %v1396 = vmul.f32 %v1269, %v1389
        %v1397 = vmul.f32 %v1270, %v1393
        %v1398 = vmul.f32 %v1266, %v1389
        %v1399 = vmul.f32 %v1267, %v1393
        %v1400 = vadd.f32 %v1379, %v1396
        %v1401 = vadd.f32 %v1380, %v1397
        %v1402 = vadd.f32 %v1381, %v1398
        %v1403 = vadd.f32 %v1382, %v1399
        %1404 = vrot.lane.b32.xlu0 %v1269, 112
        %v1405 = vpop.permute.xlu0 %1404
        %1406 = vrot.lane.b32.xlu0 %v1266, 112
        %v1407 = vpop.permute.xlu0 %1406
        %1408 = vrot.lane.b32.xlu0 %v1270, 112
        %v1409 = vpop.permute.xlu0 %1408
        %1410 = vrot.lane.b32.xlu0 %v1267, 112
        %v1411 = vpop.permute.xlu0 %1410
        %1412 = vrot.lane.b32.xlu0 %v1271, 112
        %v1413 = vpop.permute.xlu0 %1412
        %1414 = vrot.lane.b32.xlu0 %v1268, 112
        %v1415 = vpop.permute.xlu0 %1414
        %v1416 = vsel %vm393, %v1409, %v1413
        %v1417 = vsel %vm393, %v1411, %v1415
        %v1418 = vsel %vm393, %v1405, %v1409
        %v1419 = vsel %vm393, %v1407, %v1411
        %s1420 = scalar_lea.vmem [#allocation6], 64
        %v1421 = vld [vmem:[%s1420] ss:$8 sm:$0x3]
        %v1423 = vlaneseq
        %v1424 = vshrl.u32 %v1423, 7
        %v1425 = vsub.s32 0, %v1424
        %v1426 = vrot.slane %v1421, %v1425
        %v1427 = vlaneseq
        %v1428 = vshrl.u32 %v1427, 7
        %v1429 = vsub.s32 1, %v1428
        %v1430 = vrot.slane %v1421, %v1429
        %v1433 = vmul.f32 %v1418, %v1426
        %v1434 = vmul.f32 %v1416, %v1430
        %v1435 = vmul.f32 %v1419, %v1426
        %v1436 = vmul.f32 %v1417, %v1430
        %v1437 = vadd.f32 %v1400, %v1433
        %v1438 = vadd.f32 %v1401, %v1434
        %v1439 = vadd.f32 %v1402, %v1435
        %v1440 = vadd.f32 %v1403, %v1436
        %1441 = vrot.lane.b32.xlu0 %v1269, 96
        %v1442 = vpop.permute.xlu0 %1441
        %1443 = vrot.lane.b32.xlu0 %v1266, 96
        %v1444 = vpop.permute.xlu0 %1443
        %1445 = vrot.lane.b32.xlu0 %v1270, 96
        %v1446 = vpop.permute.xlu0 %1445
        %1447 = vrot.lane.b32.xlu0 %v1267, 96
        %v1448 = vpop.permute.xlu0 %1447
        %1449 = vrot.lane.b32.xlu0 %v1271, 96
        %v1450 = vpop.permute.xlu0 %1449
        %1451 = vrot.lane.b32.xlu0 %v1268, 96
        %v1452 = vpop.permute.xlu0 %1451
        %v1453 = vsel %vm431, %v1446, %v1450
        %v1454 = vsel %vm431, %v1448, %v1452
        %v1455 = vsel %vm431, %v1442, %v1446
        %v1456 = vsel %vm431, %v1444, %v1448
        %s1457 = scalar_lea.vmem [#allocation6], 65
        %v1458 = vld [vmem:[%s1457] ss:$8 sm:$0x3]
        %v1460 = vlaneseq
        %v1461 = vshrl.u32 %v1460, 7
        %v1462 = vsub.s32 0, %v1461
        %v1463 = vrot.slane %v1458, %v1462
        %v1464 = vlaneseq
        %v1465 = vshrl.u32 %v1464, 7
        %v1466 = vsub.s32 1, %v1465
        %v1467 = vrot.slane %v1458, %v1466
        %v1470 = vmul.f32 %v1455, %v1463
        %v1471 = vmul.f32 %v1453, %v1467
        %v1472 = vmul.f32 %v1456, %v1463
        %v1473 = vmul.f32 %v1454, %v1467
        %v1474 = vadd.f32 %v1437, %v1470
        %v1475 = vadd.f32 %v1438, %v1471
        %v1476 = vadd.f32 %v1439, %v1472
        %v1477 = vadd.f32 %v1440, %v1473
        %1478 = vrot.lane.b32.xlu0 %v1269, 80
        %v1479 = vpop.permute.xlu0 %1478
        %1480 = vrot.lane.b32.xlu0 %v1266, 80
        %v1481 = vpop.permute.xlu0 %1480
        %1482 = vrot.lane.b32.xlu0 %v1270, 80
        %v1483 = vpop.permute.xlu0 %1482
        %1484 = vrot.lane.b32.xlu0 %v1267, 80
        %v1485 = vpop.permute.xlu0 %1484
        %1486 = vrot.lane.b32.xlu0 %v1271, 80
        %v1487 = vpop.permute.xlu0 %1486
        %1488 = vrot.lane.b32.xlu0 %v1268, 80
        %v1489 = vpop.permute.xlu0 %1488
        %v1490 = vsel %vm469, %v1483, %v1487
        %v1491 = vsel %vm469, %v1485, %v1489
        %v1492 = vsel %vm469, %v1479, %v1483
        %v1493 = vsel %vm469, %v1481, %v1485
        %s1494 = scalar_lea.vmem [#allocation6], 66
        %v1495 = vld [vmem:[%s1494] ss:$8 sm:$0x3]
        %v1497 = vlaneseq
        %v1498 = vshrl.u32 %v1497, 7
        %v1499 = vsub.s32 0, %v1498
        %v1500 = vrot.slane %v1495, %v1499
        %v1501 = vlaneseq
        %v1502 = vshrl.u32 %v1501, 7
        %v1503 = vsub.s32 1, %v1502
        %v1504 = vrot.slane %v1495, %v1503
        %v1507 = vmul.f32 %v1492, %v1500
        %v1508 = vmul.f32 %v1490, %v1504
        %v1509 = vmul.f32 %v1493, %v1500
        %v1510 = vmul.f32 %v1491, %v1504
        %v1511 = vadd.f32 %v1474, %v1507
        %v1512 = vadd.f32 %v1475, %v1508
        %v1513 = vadd.f32 %v1476, %v1509
        %v1514 = vadd.f32 %v1477, %v1510
        %v1515 = vrot.slane %v218, 2
        %v1516 = vrot.slane %v219, 2
        %v1517 = vrot.slane %v220, 2
        %v1518 = vrot.slane %v221, 2
        %v1519 = vrot.slane %v222, 2
        %v1520 = vrot.slane %v223, 2
        %v1521 = vrot.slane %v224, 2
        %v1522 = vrot.slane %v225, 2
        %v1523 = vrot.slane %v226, 2
        %vm1524 = vcmp.lt.s32.totalorder %v237, 6
        %v1525 = vsel %vm1524, %v1518, %v1521
        %v1526 = vsel %vm1524, %v1519, %v1522
        %v1527 = vsel %vm1524, %v1520, %v1523
        %v1528 = vsel %vm1524, %v1515, %v1518
        %v1529 = vsel %vm1524, %v1516, %v1519
        %v1530 = vsel %vm1524, %v1517, %v1520
        %1531 = vrot.lane.b32.xlu0 %v1528, 48
        %v1532 = vpop.permute.xlu0 %1531
        %1533 = vrot.lane.b32.xlu0 %v1525, 48
        %v1534 = vpop.permute.xlu0 %1533
        %1535 = vrot.lane.b32.xlu0 %v1529, 48
        %v1536 = vpop.permute.xlu0 %1535
        %1537 = vrot.lane.b32.xlu0 %v1526, 48
        %v1538 = vpop.permute.xlu0 %1537
        %1539 = vrot.lane.b32.xlu0 %v1530, 48
        %v1540 = vpop.permute.xlu0 %1539
        %1541 = vrot.lane.b32.xlu0 %v1527, 48
        %v1542 = vpop.permute.xlu0 %1541
        %v1543 = vsel %vm259, %v1532, %v1536
        %v1544 = vsel %vm259, %v1534, %v1538
        %v1545 = vsel %vm259, %v1540, %v1532
        %v1546 = vsel %vm259, %v1542, %v1534
        %s1547 = scalar_lea.vmem [#allocation6], 67
        %v1548 = vld [vmem:[%s1547] ss:$8 sm:$0x3]
        %v1550 = vlaneseq
        %v1551 = vshrl.u32 %v1550, 7
        %v1552 = vsub.s32 0, %v1551
        %v1553 = vrot.slane %v1548, %v1552
        %v1554 = vlaneseq
        %v1555 = vshrl.u32 %v1554, 7
        %v1556 = vsub.s32 1, %v1555
        %v1557 = vrot.slane %v1548, %v1556
        %v1560 = vmul.f32 %v1545, %v1553
        %v1561 = vmul.f32 %v1543, %v1557
        %v1562 = vmul.f32 %v1546, %v1553
        %v1563 = vmul.f32 %v1544, %v1557
        %v1564 = vadd.f32 %v1511, %v1560
        %v1565 = vadd.f32 %v1512, %v1561
        %v1566 = vadd.f32 %v1513, %v1562
        %v1567 = vadd.f32 %v1514, %v1563
        %1568 = vrot.lane.b32.xlu0 %v1528, 32
        %v1569 = vpop.permute.xlu0 %1568
        %1570 = vrot.lane.b32.xlu0 %v1525, 32
        %v1571 = vpop.permute.xlu0 %1570
        %1572 = vrot.lane.b32.xlu0 %v1529, 32
        %v1573 = vpop.permute.xlu0 %1572
        %1574 = vrot.lane.b32.xlu0 %v1526, 32
        %v1575 = vpop.permute.xlu0 %1574
        %1576 = vrot.lane.b32.xlu0 %v1530, 32
        %v1577 = vpop.permute.xlu0 %1576
        %1578 = vrot.lane.b32.xlu0 %v1527, 32
        %v1579 = vpop.permute.xlu0 %1578
        %v1580 = vsel %vm296, %v1569, %v1573
        %v1581 = vsel %vm296, %v1571, %v1575
        %v1582 = vsel %vm296, %v1577, %v1569
        %v1583 = vsel %vm296, %v1579, %v1571
        %s1584 = scalar_lea.vmem [#allocation6], 68
        %v1585 = vld [vmem:[%s1584] ss:$8 sm:$0x3]
        %v1587 = vlaneseq
        %v1588 = vshrl.u32 %v1587, 7
        %v1589 = vsub.s32 0, %v1588
        %v1590 = vrot.slane %v1585, %v1589
        %v1591 = vlaneseq
        %v1592 = vshrl.u32 %v1591, 7
        %v1593 = vsub.s32 1, %v1592
        %v1594 = vrot.slane %v1585, %v1593
        %v1597 = vmul.f32 %v1582, %v1590
        %v1598 = vmul.f32 %v1580, %v1594
        %v1599 = vmul.f32 %v1583, %v1590
        %v1600 = vmul.f32 %v1581, %v1594
        %v1601 = vadd.f32 %v1564, %v1597
        %v1602 = vadd.f32 %v1565, %v1598
        %v1603 = vadd.f32 %v1566, %v1599
        %v1604 = vadd.f32 %v1567, %v1600
        %1605 = vrot.lane.b32.xlu0 %v1528, 16
        %v1606 = vpop.permute.xlu0 %1605
        %1607 = vrot.lane.b32.xlu0 %v1525, 16
        %v1608 = vpop.permute.xlu0 %1607
        %1609 = vrot.lane.b32.xlu0 %v1529, 16
        %v1610 = vpop.permute.xlu0 %1609
        %1611 = vrot.lane.b32.xlu0 %v1526, 16
        %v1612 = vpop.permute.xlu0 %1611
        %1613 = vrot.lane.b32.xlu0 %v1530, 16
        %v1614 = vpop.permute.xlu0 %1613
        %1615 = vrot.lane.b32.xlu0 %v1527, 16
        %v1616 = vpop.permute.xlu0 %1615
        %v1617 = vsel %vm334, %v1606, %v1610
        %v1618 = vsel %vm334, %v1608, %v1612
        %v1619 = vsel %vm334, %v1614, %v1606
        %v1620 = vsel %vm334, %v1616, %v1608
        %s1621 = scalar_lea.vmem [#allocation6], 69
        %v1622 = vld [vmem:[%s1621] ss:$8 sm:$0x3]
        %v1624 = vlaneseq
        %v1625 = vshrl.u32 %v1624, 7
        %v1626 = vsub.s32 0, %v1625
        %v1627 = vrot.slane %v1622, %v1626
        %v1628 = vlaneseq
        %v1629 = vshrl.u32 %v1628, 7
        %v1630 = vsub.s32 1, %v1629
        %v1631 = vrot.slane %v1622, %v1630
        %v1634 = vmul.f32 %v1619, %v1627
        %v1635 = vmul.f32 %v1617, %v1631
        %v1636 = vmul.f32 %v1620, %v1627
        %v1637 = vmul.f32 %v1618, %v1631
        %v1638 = vadd.f32 %v1601, %v1634
        %v1639 = vadd.f32 %v1602, %v1635
        %v1640 = vadd.f32 %v1603, %v1636
        %v1641 = vadd.f32 %v1604, %v1637
        %s1642 = scalar_lea.vmem [#allocation6], 70
        %v1643 = vld [vmem:[%s1642] ss:$8 sm:$0x3]
        %v1645 = vlaneseq
        %v1646 = vshrl.u32 %v1645, 7
        %v1647 = vsub.s32 0, %v1646
        %v1648 = vrot.slane %v1643, %v1647
        %v1649 = vlaneseq
        %v1650 = vshrl.u32 %v1649, 7
        %v1651 = vsub.s32 1, %v1650
        %v1652 = vrot.slane %v1643, %v1651
        %v1655 = vmul.f32 %v1528, %v1648
        %v1656 = vmul.f32 %v1529, %v1652
        %v1657 = vmul.f32 %v1525, %v1648
        %v1658 = vmul.f32 %v1526, %v1652
        %v1659 = vadd.f32 %v1638, %v1655
        %v1660 = vadd.f32 %v1639, %v1656
        %v1661 = vadd.f32 %v1640, %v1657
        %v1662 = vadd.f32 %v1641, %v1658
        %1663 = vrot.lane.b32.xlu0 %v1528, 112
        %v1664 = vpop.permute.xlu0 %1663
        %1665 = vrot.lane.b32.xlu0 %v1525, 112
        %v1666 = vpop.permute.xlu0 %1665
        %1667 = vrot.lane.b32.xlu0 %v1529, 112
        %v1668 = vpop.permute.xlu0 %1667
        %1669 = vrot.lane.b32.xlu0 %v1526, 112
        %v1670 = vpop.permute.xlu0 %1669
        %1671 = vrot.lane.b32.xlu0 %v1530, 112
        %v1672 = vpop.permute.xlu0 %1671
        %1673 = vrot.lane.b32.xlu0 %v1527, 112
        %v1674 = vpop.permute.xlu0 %1673
        %v1675 = vsel %vm393, %v1668, %v1672
        %v1676 = vsel %vm393, %v1670, %v1674
        %v1677 = vsel %vm393, %v1664, %v1668
        %v1678 = vsel %vm393, %v1666, %v1670
        %s1679 = scalar_lea.vmem [#allocation6], 71
        %v1680 = vld [vmem:[%s1679] ss:$8 sm:$0x3]
        %v1682 = vlaneseq
        %v1683 = vshrl.u32 %v1682, 7
        %v1684 = vsub.s32 0, %v1683
        %v1685 = vrot.slane %v1680, %v1684
        %v1686 = vlaneseq
        %v1687 = vshrl.u32 %v1686, 7
        %v1688 = vsub.s32 1, %v1687
        %v1689 = vrot.slane %v1680, %v1688
        %v1692 = vmul.f32 %v1677, %v1685
        %v1693 = vmul.f32 %v1675, %v1689
        %v1694 = vmul.f32 %v1678, %v1685
        %v1695 = vmul.f32 %v1676, %v1689
        %v1696 = vadd.f32 %v1659, %v1692
        %v1697 = vadd.f32 %v1660, %v1693
        %v1698 = vadd.f32 %v1661, %v1694
        %v1699 = vadd.f32 %v1662, %v1695
        %1700 = vrot.lane.b32.xlu0 %v1528, 96
        %v1701 = vpop.permute.xlu0 %1700
        %1702 = vrot.lane.b32.xlu0 %v1525, 96
        %v1703 = vpop.permute.xlu0 %1702
        %1704 = vrot.lane.b32.xlu0 %v1529, 96
        %v1705 = vpop.permute.xlu0 %1704
        %1706 = vrot.lane.b32.xlu0 %v1526, 96
        %v1707 = vpop.permute.xlu0 %1706
        %1708 = vrot.lane.b32.xlu0 %v1530, 96
        %v1709 = vpop.permute.xlu0 %1708
        %1710 = vrot.lane.b32.xlu0 %v1527, 96
        %v1711 = vpop.permute.xlu0 %1710
        %v1712 = vsel %vm431, %v1705, %v1709
        %v1713 = vsel %vm431, %v1707, %v1711
        %v1714 = vsel %vm431, %v1701, %v1705
        %v1715 = vsel %vm431, %v1703, %v1707
        %s1716 = scalar_lea.vmem [#allocation6], 80
        %v1717 = vld [vmem:[%s1716] ss:$8 sm:$0x3]
        %v1719 = vlaneseq
        %v1720 = vshrl.u32 %v1719, 7
        %v1721 = vsub.s32 0, %v1720
        %v1722 = vrot.slane %v1717, %v1721
        %v1723 = vlaneseq
        %v1724 = vshrl.u32 %v1723, 7
        %v1725 = vsub.s32 1, %v1724
        %v1726 = vrot.slane %v1717, %v1725
        %v1729 = vmul.f32 %v1714, %v1722
        %v1730 = vmul.f32 %v1712, %v1726
        %v1731 = vmul.f32 %v1715, %v1722
        %v1732 = vmul.f32 %v1713, %v1726
        %v1733 = vadd.f32 %v1696, %v1729
        %v1734 = vadd.f32 %v1697, %v1730
        %v1735 = vadd.f32 %v1698, %v1731
        %v1736 = vadd.f32 %v1699, %v1732
        %1737 = vrot.lane.b32.xlu0 %v1528, 80
        %v1738 = vpop.permute.xlu0 %1737
        %1739 = vrot.lane.b32.xlu0 %v1525, 80
        %v1740 = vpop.permute.xlu0 %1739
        %1741 = vrot.lane.b32.xlu0 %v1529, 80
        %v1742 = vpop.permute.xlu0 %1741
        %1743 = vrot.lane.b32.xlu0 %v1526, 80
        %v1744 = vpop.permute.xlu0 %1743
        %1745 = vrot.lane.b32.xlu0 %v1530, 80
        %v1746 = vpop.permute.xlu0 %1745
        %1747 = vrot.lane.b32.xlu0 %v1527, 80
        %v1748 = vpop.permute.xlu0 %1747
        %v1749 = vsel %vm469, %v1742, %v1746
        %v1750 = vsel %vm469, %v1744, %v1748
        %v1751 = vsel %vm469, %v1738, %v1742
        %v1752 = vsel %vm469, %v1740, %v1744
        %s1753 = scalar_lea.vmem [#allocation6], 81
        %v1754 = vld [vmem:[%s1753] ss:$8 sm:$0x3]
        %v1756 = vlaneseq
        %v1757 = vshrl.u32 %v1756, 7
        %v1758 = vsub.s32 0, %v1757
        %v1759 = vrot.slane %v1754, %v1758
        %v1760 = vlaneseq
        %v1761 = vshrl.u32 %v1760, 7
        %v1762 = vsub.s32 1, %v1761
        %v1763 = vrot.slane %v1754, %v1762
        %v1766 = vmul.f32 %v1751, %v1759
        %v1767 = vmul.f32 %v1749, %v1763
        %v1768 = vmul.f32 %v1752, %v1759
        %v1769 = vmul.f32 %v1750, %v1763
        %v1770 = vadd.f32 %v1733, %v1766
        %v1771 = vadd.f32 %v1734, %v1767
        %v1772 = vadd.f32 %v1735, %v1768
        %v1773 = vadd.f32 %v1736, %v1769
        %v1774 = vrot.slane %v218, 3
        %v1775 = vrot.slane %v219, 3
        %v1776 = vrot.slane %v220, 3
        %v1777 = vrot.slane %v221, 3
        %v1778 = vrot.slane %v222, 3
        %v1779 = vrot.slane %v223, 3
        %v1780 = vrot.slane %v224, 3
        %v1781 = vrot.slane %v225, 3
        %v1782 = vrot.slane %v226, 3
        %vm1783 = vcmp.lt.s32.totalorder %v237, 5
        %v1784 = vsel %vm1783, %v1777, %v1780
        %v1785 = vsel %vm1783, %v1778, %v1781
        %v1786 = vsel %vm1783, %v1779, %v1782
        %v1787 = vsel %vm1783, %v1774, %v1777
        %v1788 = vsel %vm1783, %v1775, %v1778
        %v1789 = vsel %vm1783, %v1776, %v1779
        %1790 = vrot.lane.b32.xlu0 %v1787, 48
        %v1791 = vpop.permute.xlu0 %1790
        %1792 = vrot.lane.b32.xlu0 %v1784, 48
        %v1793 = vpop.permute.xlu0 %1792
        %1794 = vrot.lane.b32.xlu0 %v1788, 48
        %v1795 = vpop.permute.xlu0 %1794
        %1796 = vrot.lane.b32.xlu0 %v1785, 48
        %v1797 = vpop.permute.xlu0 %1796
        %1798 = vrot.lane.b32.xlu0 %v1789, 48
        %v1799 = vpop.permute.xlu0 %1798
        %1800 = vrot.lane.b32.xlu0 %v1786, 48
        %v1801 = vpop.permute.xlu0 %1800
        %v1802 = vsel %vm259, %v1791, %v1795
        %v1803 = vsel %vm259, %v1793, %v1797
        %v1804 = vsel %vm259, %v1799, %v1791
        %v1805 = vsel %vm259, %v1801, %v1793
        %s1806 = scalar_lea.vmem [#allocation6], 82
        %v1807 = vld [vmem:[%s1806] ss:$8 sm:$0x3]
        %v1809 = vlaneseq
        %v1810 = vshrl.u32 %v1809, 7
        %v1811 = vsub.s32 0, %v1810
        %v1812 = vrot.slane %v1807, %v1811
        %v1813 = vlaneseq
        %v1814 = vshrl.u32 %v1813, 7
        %v1815 = vsub.s32 1, %v1814
        %v1816 = vrot.slane %v1807, %v1815
        %v1819 = vmul.f32 %v1804, %v1812
        %v1820 = vmul.f32 %v1802, %v1816
        %v1821 = vmul.f32 %v1805, %v1812
        %v1822 = vmul.f32 %v1803, %v1816
        %v1823 = vadd.f32 %v1770, %v1819
        %v1824 = vadd.f32 %v1771, %v1820
        %v1825 = vadd.f32 %v1772, %v1821
        %v1826 = vadd.f32 %v1773, %v1822
        %1827 = vrot.lane.b32.xlu0 %v1787, 32
        %v1828 = vpop.permute.xlu0 %1827
        %1829 = vrot.lane.b32.xlu0 %v1784, 32
        %v1830 = vpop.permute.xlu0 %1829
        %1831 = vrot.lane.b32.xlu0 %v1788, 32
        %v1832 = vpop.permute.xlu0 %1831
        %1833 = vrot.lane.b32.xlu0 %v1785, 32
        %v1834 = vpop.permute.xlu0 %1833
        %1835 = vrot.lane.b32.xlu0 %v1789, 32
        %v1836 = vpop.permute.xlu0 %1835
        %1837 = vrot.lane.b32.xlu0 %v1786, 32
        %v1838 = vpop.permute.xlu0 %1837
        %v1839 = vsel %vm296, %v1828, %v1832
        %v1840 = vsel %vm296, %v1830, %v1834
        %v1841 = vsel %vm296, %v1836, %v1828
        %v1842 = vsel %vm296, %v1838, %v1830
        %s1843 = scalar_lea.vmem [#allocation6], 83
        %v1844 = vld [vmem:[%s1843] ss:$8 sm:$0x3]
        %v1846 = vlaneseq
        %v1847 = vshrl.u32 %v1846, 7
        %v1848 = vsub.s32 0, %v1847
        %v1849 = vrot.slane %v1844, %v1848
        %v1850 = vlaneseq
        %v1851 = vshrl.u32 %v1850, 7
        %v1852 = vsub.s32 1, %v1851
        %v1853 = vrot.slane %v1844, %v1852
        %v1856 = vmul.f32 %v1841, %v1849
        %v1857 = vmul.f32 %v1839, %v1853
        %v1858 = vmul.f32 %v1842, %v1849
        %v1859 = vmul.f32 %v1840, %v1853
        %v1860 = vadd.f32 %v1823, %v1856
        %v1861 = vadd.f32 %v1824, %v1857
        %v1862 = vadd.f32 %v1825, %v1858
        %v1863 = vadd.f32 %v1826, %v1859
        %1864 = vrot.lane.b32.xlu0 %v1787, 16
        %v1865 = vpop.permute.xlu0 %1864
        %1866 = vrot.lane.b32.xlu0 %v1784, 16
        %v1867 = vpop.permute.xlu0 %1866
        %1868 = vrot.lane.b32.xlu0 %v1788, 16
        %v1869 = vpop.permute.xlu0 %1868
        %1870 = vrot.lane.b32.xlu0 %v1785, 16
        %v1871 = vpop.permute.xlu0 %1870
        %1872 = vrot.lane.b32.xlu0 %v1789, 16
        %v1873 = vpop.permute.xlu0 %1872
        %1874 = vrot.lane.b32.xlu0 %v1786, 16
        %v1875 = vpop.permute.xlu0 %1874
        %v1876 = vsel %vm334, %v1865, %v1869
        %v1877 = vsel %vm334, %v1867, %v1871
        %v1878 = vsel %vm334, %v1873, %v1865
        %v1879 = vsel %vm334, %v1875, %v1867
        %s1880 = scalar_lea.vmem [#allocation6], 84
        %v1881 = vld [vmem:[%s1880] ss:$8 sm:$0x3]
        %v1883 = vlaneseq
        %v1884 = vshrl.u32 %v1883, 7
        %v1885 = vsub.s32 0, %v1884
        %v1886 = vrot.slane %v1881, %v1885
        %v1887 = vlaneseq
        %v1888 = vshrl.u32 %v1887, 7
        %v1889 = vsub.s32 1, %v1888
        %v1890 = vrot.slane %v1881, %v1889
        %v1893 = vmul.f32 %v1878, %v1886
        %v1894 = vmul.f32 %v1876, %v1890
        %v1895 = vmul.f32 %v1879, %v1886
        %v1896 = vmul.f32 %v1877, %v1890
        %v1897 = vadd.f32 %v1860, %v1893
        %v1898 = vadd.f32 %v1861, %v1894
        %v1899 = vadd.f32 %v1862, %v1895
        %v1900 = vadd.f32 %v1863, %v1896
        %s1901 = scalar_lea.vmem [#allocation6], 85
        %v1902 = vld [vmem:[%s1901] ss:$8 sm:$0x3]
        %v1904 = vlaneseq
        %v1905 = vshrl.u32 %v1904, 7
        %v1906 = vsub.s32 0, %v1905
        %v1907 = vrot.slane %v1902, %v1906
        %v1908 = vlaneseq
        %v1909 = vshrl.u32 %v1908, 7
        %v1910 = vsub.s32 1, %v1909
        %v1911 = vrot.slane %v1902, %v1910
        %v1914 = vmul.f32 %v1787, %v1907
        %v1915 = vmul.f32 %v1788, %v1911
        %v1916 = vmul.f32 %v1784, %v1907
        %v1917 = vmul.f32 %v1785, %v1911
        %v1918 = vadd.f32 %v1897, %v1914
        %v1919 = vadd.f32 %v1898, %v1915
        %v1920 = vadd.f32 %v1899, %v1916
        %v1921 = vadd.f32 %v1900, %v1917
        %1922 = vrot.lane.b32.xlu0 %v1787, 112
        %v1923 = vpop.permute.xlu0 %1922
        %1924 = vrot.lane.b32.xlu0 %v1784, 112
        %v1925 = vpop.permute.xlu0 %1924
        %1926 = vrot.lane.b32.xlu0 %v1788, 112
        %v1927 = vpop.permute.xlu0 %1926
        %1928 = vrot.lane.b32.xlu0 %v1785, 112
        %v1929 = vpop.permute.xlu0 %1928
        %1930 = vrot.lane.b32.xlu0 %v1789, 112
        %v1931 = vpop.permute.xlu0 %1930
        %1932 = vrot.lane.b32.xlu0 %v1786, 112
        %v1933 = vpop.permute.xlu0 %1932
        %v1934 = vsel %vm393, %v1927, %v1931
        %v1935 = vsel %vm393, %v1929, %v1933
        %v1936 = vsel %vm393, %v1923, %v1927
        %v1937 = vsel %vm393, %v1925, %v1929
        %s1938 = scalar_lea.vmem [#allocation6], 86
        %v1939 = vld [vmem:[%s1938] ss:$8 sm:$0x3]
        %v1941 = vlaneseq
        %v1942 = vshrl.u32 %v1941, 7
        %v1943 = vsub.s32 0, %v1942
        %v1944 = vrot.slane %v1939, %v1943
        %v1945 = vlaneseq
        %v1946 = vshrl.u32 %v1945, 7
        %v1947 = vsub.s32 1, %v1946
        %v1948 = vrot.slane %v1939, %v1947
        %v1951 = vmul.f32 %v1936, %v1944
        %v1952 = vmul.f32 %v1934, %v1948
        %v1953 = vmul.f32 %v1937, %v1944
        %v1954 = vmul.f32 %v1935, %v1948
        %v1955 = vadd.f32 %v1918, %v1951
        %v1956 = vadd.f32 %v1919, %v1952
        %v1957 = vadd.f32 %v1920, %v1953
        %v1958 = vadd.f32 %v1921, %v1954
        %1959 = vrot.lane.b32.xlu0 %v1787, 96
        %v1960 = vpop.permute.xlu0 %1959
        %1961 = vrot.lane.b32.xlu0 %v1784, 96
        %v1962 = vpop.permute.xlu0 %1961
        %1963 = vrot.lane.b32.xlu0 %v1788, 96
        %v1964 = vpop.permute.xlu0 %1963
        %1965 = vrot.lane.b32.xlu0 %v1785, 96
        %v1966 = vpop.permute.xlu0 %1965
        %1967 = vrot.lane.b32.xlu0 %v1789, 96
        %v1968 = vpop.permute.xlu0 %1967
        %1969 = vrot.lane.b32.xlu0 %v1786, 96
        %v1970 = vpop.permute.xlu0 %1969
        %v1971 = vsel %vm431, %v1964, %v1968
        %v1972 = vsel %vm431, %v1966, %v1970
        %v1973 = vsel %vm431, %v1960, %v1964
        %v1974 = vsel %vm431, %v1962, %v1966
        %s1975 = scalar_lea.vmem [#allocation6], 87
        %v1976 = vld [vmem:[%s1975] ss:$8 sm:$0x3]
        %v1978 = vlaneseq
        %v1979 = vshrl.u32 %v1978, 7
        %v1980 = vsub.s32 0, %v1979
        %v1981 = vrot.slane %v1976, %v1980
        %v1982 = vlaneseq
        %v1983 = vshrl.u32 %v1982, 7
        %v1984 = vsub.s32 1, %v1983
        %v1985 = vrot.slane %v1976, %v1984
        %v1988 = vmul.f32 %v1973, %v1981
        %v1989 = vmul.f32 %v1971, %v1985
        %v1990 = vmul.f32 %v1974, %v1981
        %v1991 = vmul.f32 %v1972, %v1985
        %v1992 = vadd.f32 %v1955, %v1988
        %v1993 = vadd.f32 %v1956, %v1989
        %v1994 = vadd.f32 %v1957, %v1990
        %v1995 = vadd.f32 %v1958, %v1991
        %1996 = vrot.lane.b32.xlu0 %v1787, 80
        %v1997 = vpop.permute.xlu0 %1996
        %1998 = vrot.lane.b32.xlu0 %v1784, 80
        %v1999 = vpop.permute.xlu0 %1998
        %2000 = vrot.lane.b32.xlu0 %v1788, 80
        %v2001 = vpop.permute.xlu0 %2000
        %2002 = vrot.lane.b32.xlu0 %v1785, 80
        %v2003 = vpop.permute.xlu0 %2002
        %2004 = vrot.lane.b32.xlu0 %v1789, 80
        %v2005 = vpop.permute.xlu0 %2004
        %2006 = vrot.lane.b32.xlu0 %v1786, 80
        %v2007 = vpop.permute.xlu0 %2006
        %v2008 = vsel %vm469, %v2001, %v2005
        %v2009 = vsel %vm469, %v2003, %v2007
        %v2010 = vsel %vm469, %v1997, %v2001
        %v2011 = vsel %vm469, %v1999, %v2003
        %s2012 = scalar_lea.vmem [#allocation6], 96
        %v2013 = vld [vmem:[%s2012] ss:$8 sm:$0x3]
        %v2015 = vlaneseq
        %v2016 = vshrl.u32 %v2015, 7
        %v2017 = vsub.s32 0, %v2016
        %v2018 = vrot.slane %v2013, %v2017
        %v2019 = vlaneseq
        %v2020 = vshrl.u32 %v2019, 7
        %v2021 = vsub.s32 1, %v2020
        %v2022 = vrot.slane %v2013, %v2021
        %v2025 = vmul.f32 %v2010, %v2018
        %v2026 = vmul.f32 %v2008, %v2022
        %v2027 = vmul.f32 %v2011, %v2018
        %v2028 = vmul.f32 %v2009, %v2022
        %v2029 = vadd.f32 %v1992, %v2025
        %v2030 = vadd.f32 %v1993, %v2026
        %v2031 = vadd.f32 %v1994, %v2027
        %v2032 = vadd.f32 %v1995, %v2028
        %v2033 = vld [vmem:[%s2] sm:$0x3]
        %v2035 = vlaneseq
        %v2036 = vshrl.u32 %v2035, 7
        %v2037 = vsub.s32 0, %v2036
        %v2038 = vrot.slane %v2033, %v2037
        %v2039 = vlaneseq
        %v2040 = vshrl.u32 %v2039, 7
        %v2041 = vsub.s32 1, %v2040
        %v2042 = vrot.slane %v2033, %v2041
        %v2045 = vadd.f32 %v2029, %v2038
        %v2046 = vadd.f32 %v2030, %v2042
        %v2047 = vadd.f32 %v2031, %v2038
        %v2048 = vadd.f32 %v2032, %v2042
        %2049 = vst [vmem:[%s203] sm:$0xff] %v2045
        %2050 = vst [vmem:[%s203 + $0x8] sm:$0xff] %v2046
        %2051 = vst [vmem:[%s203 + $0x10] sm:$0xff] %v2047
        %2052 = vst [vmem:[%s203 + $0x18] sm:$0xff] %v2048
        %s2053 = sand.u32 %s97, 1
        %s2054 = scalar_lea.sflag [#allocation5], %s2053
        %s2055 = sand.u32 %s97, 1
        %s2056 = smul.addr %s2055, 32
        %s2057 = scalar_lea.vmem [#allocation8], %s2056
        // Predicated region
        $region41: #{tpu_custom_call.1} parent=31 // pred_check
          %p2058 = pneg %p107
        $region42: #{tpu_custom_call.1} parent=31 // pred_check_branch
          %2060 = sbr.rel (%p2058) target = $region44
        $region43: #{tpu_custom_call.1} parent=31 // pred_region
          %s2062 = ssub.s32 512, 512
          %2063 = vsyncadd %s2054, %s2062
          %s2064 = smul.addr %s21, 4
          %s2065 = smul.addr %s2064, 128
          %s2066 = scalar_lea.hbm %s3, %s2065
          %s2067 = sshll.u32 %s2057, 4
          %s2068 = int_to_ptr.vmem [resolvable:$true] %s2067
          %2073 = dma.vmem_to_hbm [thread:$0]  %s2068, 512, %s2066, %s2054, 256, 256, 16
        $region44: #{tpu_custom_call.1} parent=31 // pred_fallthru
          _
      $region32: #{tpu_custom_call.1} parent=5 // pred_fallthru
        _
      %p2074 = scmp.le.s32.totalorder 2, %s16
      // Predicated region
      $region45: #{tpu_custom_call.1} parent=5 // pred_check
        %p2075 = pneg %p2074
      $region46: #{tpu_custom_call.1} parent=5 // pred_check_branch
        %2077 = sbr.rel (%p2075) target = $region48
      $region47: #{tpu_custom_call.1} parent=5 // pred_region
        %s2078 = ssub.s32 %s16, 2
        // Predicated region
        $region49: #{tpu_custom_call.1} parent=47 // pred_check
          %p2079 = pneg %p113
        $region50: #{tpu_custom_call.1} parent=47 // pred_check_branch
          %2081 = sbr.rel (%p2079) target = $region52
        $region51: #{tpu_custom_call.1} parent=47 // pred_region
          %s2082 = sand.u32 %s98, 1
          %s2083 = scalar_lea.sflag [#allocation5], %s2082
          %s2084 = sand.u32 %s98, 1
          %s2085 = smul.addr %s2084, 32
          %s2086 = scalar_lea.vmem [#allocation8], %s2085
          %2087 = dma.done %s2083, 512
        $region52: #{tpu_custom_call.1} parent=47 // pred_fallthru
          _
      $region48: #{tpu_custom_call.1} parent=5 // pred_fallthru
        _
    $region6: #{tpu_custom_call.1} parent=1 // loop_footer
      %s20 = sadd.s32 1, %s16
    $region7: #{tpu_custom_call.1} parent=1 // loop_footer_branch
      %15 = sbr.rel target = $region3
    $region8: #{tpu_custom_call.1} parent=1 // loop_exit
      _
    %2088 = vsyncpa [#allocation4], 1
    %s2089 = scalar_lea.sflag [#allocation4], 1
    %2090 = vsyncpa %s2089, 1
    %2091 = vsyncpa [#allocation7], 1
    %2092 = vsyncpa [#allocation5], 1
    %s2093 = scalar_lea.sflag [#allocation5], 1
    %2094 = vsyncpa %s2093, 1

</llo_original>
